<compile_context>
chip_gen: v5e
topology: v5e:2x2
jax: 0.10.0
libtpu: 0.0.40
codegen_flags: <defaults>
</compile_context>

<pallas_src>
import math
import jax
import jax.numpy as jnp
from jax.experimental import pallas as pl
from jax.experimental.pallas import tpu as pltpu

# ---------------- config (small, consistent with the module) ----------------
VOCAB = 64
NUM_LAYERS = 2
D_MODEL = 32
N_HEADS = 4
D_KV = 8
INNER = N_HEADS * D_KV          # 32
D_FF = 64
NUM_BUCKETS = 32
MAX_DISTANCE = 128
EPS = 1e-6
NEG_MASK = -1e9                 # large-but-finite additive mask (exp underflows to 0,
                                # numerically identical to HF's finfo.min, more robust)
# is_decoder=False, is_gated_act=True, shared positional bias, dropout_rate=0.0


def _gelu_new(x):
    # HF "gelu_new": 0.5 * x * (1 + tanh(sqrt(2/pi) * (x + 0.044715 x^3)))
    return 0.5 * x * (1.0 + jnp.tanh(math.sqrt(2.0 / math.pi)
                                     * (x + 0.044715 * x * x * x)))


def _rmsnorm(x, w_row):
    # T5LayerNorm: no mean subtraction, variance over last dim, then scale (f32).
    var = jnp.mean(x * x, axis=-1, keepdims=True)
    return x * jax.lax.rsqrt(var + EPS) * w_row


# ---------------- fused Pallas kernel: whole stack per grid step ----------------
def t5_stack_kernel(h_ref, biased_ref, sa_ln_ref, wqkv_ref, wo_ref,
                    ff_ln_ref, wi_ref, woff_ref, final_ln_ref, out_ref):
    M, D = h_ref.shape                       # M = (B // groups) * S rows, batch-stacked
    h = h_ref[...]                           # [M, D] f32, resident on-chip
    # bias + padding mask + block-diagonal cross-batch mask, hoisted (built in wrapper)
    biased = biased_ref[0]                   # [H, M, M] f32

    for l in range(NUM_LAYERS):              # static unroll over layers
        wqkv = wqkv_ref[l]                   # [D, 3*INNER] bf16
        wo = wo_ref[l]                       # [INNER, D]   bf16
        wi_w = wi_ref[l]                     # [D, 2*D_FF]  bf16
        woff = woff_ref[l]                   # [D_FF, D]    bf16

        # ------------------- self-attention sublayer -------------------
        normed = _rmsnorm(h, sa_ln_ref[l])                                   # f32 [M, D]
        qkv = jnp.dot(normed.astype(jnp.bfloat16), wqkv,
                      preferred_element_type=jnp.float32)                    # [M, 3*INNER]
        attn_out = jnp.zeros((M, D), jnp.float32)
        for hd in range(N_HEADS):            # static head loop
            lo = hd * D_KV
            q = qkv[:, lo:lo + D_KV].astype(jnp.bfloat16)
            k = qkv[:, INNER + lo:INNER + lo + D_KV].astype(jnp.bfloat16)
            v = qkv[:, 2 * INNER + lo:2 * INNER + lo + D_KV].astype(jnp.bfloat16)
            # T5 does NOT scale scores by 1/sqrt(d_kv)
            scores = (jnp.dot(q, k.T, preferred_element_type=jnp.float32)
                      + biased[hd])                                          # [M, M] f32
            mx = jnp.max(scores, axis=-1, keepdims=True)
            p = jnp.exp(scores - mx)
            attn = p * pl.reciprocal(jnp.sum(p, axis=-1, keepdims=True),
                                     approx=True)
            ctx = jnp.dot(attn.astype(jnp.bfloat16), v,
                          preferred_element_type=jnp.float32)                # [M, d_kv]
            # per-head output projection (K=8 MXU push) -> no lane concat needed
            attn_out = attn_out + jnp.dot(ctx.astype(jnp.bfloat16),
                                          wo[lo:lo + D_KV, :],
                                          preferred_element_type=jnp.float32)
        h = h + attn_out                                                     # residual

        # ------------------- feed-forward sublayer (gated GELU) -------------------
        normed = _rmsnorm(h, ff_ln_ref[l])
        wi_out = jnp.dot(normed.astype(jnp.bfloat16), wi_w,
                         preferred_element_type=jnp.float32)                 # [M, 2*D_FF]
        y = _gelu_new(wi_out[:, :D_FF]) * wi_out[:, D_FF:]
        h = h + jnp.dot(y.astype(jnp.bfloat16), woff,
                        preferred_element_type=jnp.float32)                  # residual

    # ------------------- final RMSNorm -------------------
    out_ref[...] = _rmsnorm(h, final_ln_ref[...]).astype(out_ref.dtype)


def _tensorcores_per_chip():
    """1 on v5e/v6e (single TC), 2 on v7x/v4/v5p (megacore). Safe default = 1."""
    try:
        kind = jax.devices()[0].device_kind.lower()
    except Exception:
        return 1
    if "v7" in kind or "v4" in kind or "v5p" in kind:
        return 2
    return 1


def t5_stack_pallas(h_flat, biased, params, groups):
    BS, D = h_flat.shape
    M = BS // groups                   # rows per grid step
    L = NUM_LAYERS

    def rep(shape):                    # replicated (resident) weights
        nd = len(shape)
        return pl.BlockSpec(shape, lambda g, _nd=nd: (0,) * _nd)

    return pl.pallas_call(
        t5_stack_kernel,
        out_shape=jax.ShapeDtypeStruct((BS, D), h_flat.dtype),
        grid=(groups,),                # groups=1 on 1-TC chips (batch folded in-kernel),
                                       # groups=2 on v7x so both TensorCores get work
        in_specs=[
            pl.BlockSpec((M, D), lambda g: (g, 0)),                      # hidden rows
            pl.BlockSpec((1, N_HEADS, M, M), lambda g: (g, 0, 0, 0)),    # bias+mask
            rep((L, 1, D)),                                              # attn layernorm
            rep((L, D, 3 * INNER)),                                      # fused QKV (bf16)
            rep((L, INNER, D)),                                          # O proj (bf16)
            rep((L, 1, D)),                                              # FF layernorm
            rep((L, D, 2 * D_FF)),                                       # fused wi_0|wi_1
            rep((L, D_FF, D)),                                           # FF out proj
            rep((1, D)),                                                 # final layernorm
        ],
        out_specs=pl.BlockSpec((M, D), lambda g: (g, 0)),
        compiler_params=pltpu.CompilerParams(dimension_semantics=("parallel",)),
    )(h_flat, biased, params["sa_ln"], params["wqkv"], params["wo"],
      params["ff_ln"], params["wi"], params["wo_ff"], params["final_ln"])


# ---------------- glue: relative position bias (plain JAX) ----------------
def _relative_position_bucket(relative_position, num_buckets=32, max_distance=128):
    # bidirectional (encoder) variant
    num_buckets //= 2
    relative_buckets = (relative_position > 0).astype(jnp.int32) * num_buckets
    relative_position = jnp.abs(relative_position)
    max_exact = num_buckets // 2
    is_small = relative_position < max_exact
    rp_safe = jnp.maximum(relative_position, 1).astype(jnp.float32)
    rel_if_large = max_exact + (
        jnp.log(rp_safe / max_exact) / math.log(max_distance / max_exact)
        * (num_buckets - max_exact)
    ).astype(jnp.int32)
    rel_if_large = jnp.minimum(rel_if_large, num_buckets - 1)
    relative_buckets = relative_buckets + jnp.where(is_small, relative_position, rel_if_large)
    return relative_buckets


def compute_position_bias(rel_bias_weight, q_len, k_len):
    context_position = jnp.arange(q_len, dtype=jnp.int32)[:, None]
    memory_position = jnp.arange(k_len, dtype=jnp.int32)[None, :]
    relative_position = memory_position - context_position
    buckets = _relative_position_bucket(relative_position, NUM_BUCKETS, MAX_DISTANCE)
    values = rel_bias_weight[buckets]                  # [q, k, H]
    return jnp.transpose(values, (2, 0, 1))[None]      # [1, H, q, k]


def _build_biased(pos_bias, attention_mask, groups):
    """Fold relative-position bias + additive key-padding mask + block-diagonal
    cross-batch mask into one [groups, H, M, M] tensor (M = (B//groups)*S).
    Built once in the wrapper so the kernel only adds biased[hd]."""
    B, S = attention_mask.shape
    bg = B // groups
    M = bg * S
    pb = pos_bias[0]                                                  # [H, S, S]
    pad = (1.0 - attention_mask.astype(jnp.float32)) * NEG_MASK       # [B, S] (key mask)
    pad = pad.reshape(groups, bg, S)                                  # [G, bg, S]
    same = jnp.eye(bg, dtype=bool)[None, None, :, None, :, None]      # [1,1,bg,1,bg,1]
    full = (pb[None, :, None, :, None, :]                             # [1,H,1,S,1,S]
            + pad[:, None, None, None, :, :])                         # [G,1,1,1,bg,S]
    full = jnp.where(same, full, NEG_MASK)                            # block-diagonal
    return full.reshape(groups, N_HEADS, M, M)


# ---------------- parameters (layer-stacked, QKV / wi fused, matmul weights bf16) ----
def init_params(key):
    def nrm(key, shape, scale=0.05, dtype=jnp.float32):
        return (scale * jax.random.normal(key, shape)).astype(dtype)

    keys = jax.random.split(key, 8)
    return {
        "embed": nrm(keys[0], (VOCAB, D_MODEL), 1.0),
        "rel_bias": nrm(keys[1], (NUM_BUCKETS, N_HEADS), 0.1),
        "sa_ln": jnp.ones((NUM_LAYERS, 1, D_MODEL), jnp.float32),
        "wqkv": nrm(keys[2], (NUM_LAYERS, D_MODEL, 3 * INNER), dtype=jnp.bfloat16),   # [q|k|v]
        "wo": nrm(keys[3], (NUM_LAYERS, INNER, D_MODEL), dtype=jnp.bfloat16),
        "ff_ln": jnp.ones((NUM_LAYERS, 1, D_MODEL), jnp.float32),
        "wi": nrm(keys[4], (NUM_LAYERS, D_MODEL, 2 * D_FF), dtype=jnp.bfloat16),      # [wi_0|wi_1]
        "wo_ff": nrm(keys[5], (NUM_LAYERS, D_FF, D_MODEL), dtype=jnp.bfloat16),
        "final_ln": jnp.ones((1, D_MODEL), jnp.float32),
    }


# ---------------- T5 stack forward (single fused pallas_call) ----------------
def t5_stack_forward(params, input_ids, attention_mask=None):
    B, S = input_ids.shape
    hidden = params["embed"][input_ids]                          # [B, S, D] f32
    if attention_mask is None:
        attention_mask = jnp.ones((B, S), jnp.float32)

    tc = _tensorcores_per_chip()
    groups = tc if (tc > 1 and B % tc == 0) else 1               # fold batch on 1-TC chips

    # shared positional bias (layer-0 semantics, reused by all layers) + masks, hoisted
    pos_bias = compute_position_bias(params["rel_bias"], S, S)   # [1, H, S, S]
    biased = _build_biased(pos_bias, attention_mask, groups)     # [G, H, M, M]

    h_flat = hidden.reshape(B * S, D_MODEL)                      # wrapper-side layout plumbing
    out = t5_stack_pallas(h_flat, biased, params, groups)
    # dropout_rate = 0 -> identity; fp16 inf-clamp is a no-op in f32
    return out.reshape(B, S, D_MODEL), attention_mask


# ---------------- pure-JAX f32 reference (sanity check) ----------------
def _ref_forward(params, input_ids, attention_mask=None):
    B, S = input_ids.shape
    h = params["embed"][input_ids]
    if attention_mask is None:
        attention_mask = jnp.ones((B, S), jnp.float32)
    ext_mask = (1.0 - attention_mask[:, None, None, :]) * NEG_MASK
    bias = compute_position_bias(params["rel_bias"], S, S) + ext_mask   # [B,H,S,S]

    def rms(x, w):
        return x * jax.lax.rsqrt(jnp.mean(x * x, -1, keepdims=True) + EPS) * w

    for l in range(NUM_LAYERS):
        n = rms(h, params["sa_ln"][l])
        wqkv = params["wqkv"][l].astype(jnp.float32)
        wq, wk, wv = wqkv[:, :INNER], wqkv[:, INNER:2 * INNER], wqkv[:, 2 * INNER:]
        q = (n @ wq).reshape(B, S, N_HEADS, D_KV).transpose(0, 2, 1, 3)
        k = (n @ wk).reshape(B, S, N_HEADS, D_KV).transpose(0, 2, 1, 3)
        v = (n @ wv).reshape(B, S, N_HEADS, D_KV).transpose(0, 2, 1, 3)
        scores = jnp.einsum("bhqd,bhkd->bhqk", q, k) + bias
        attn = jax.nn.softmax(scores, axis=-1)
        ctx = jnp.einsum("bhqk,bhkd->bhqd", attn, v).transpose(0, 2, 1, 3).reshape(B, S, INNER)
        h = h + ctx @ params["wo"][l].astype(jnp.float32)
        n = rms(h, params["ff_ln"][l])
        wiv = n @ params["wi"][l].astype(jnp.float32)
        y = (_gelu_new(wiv[..., :D_FF]) * wiv[..., D_FF:]) @ params["wo_ff"][l].astype(jnp.float32)
        h = h + y
    return rms(h, params["final_ln"]), attention_mask


if __name__ == "__main__":
    key = jax.random.PRNGKey(0)
    pkey, dkey = jax.random.split(key)
    params = init_params(pkey)

    B, S = 2, 8
    input_ids = jax.random.randint(dkey, (B, S), 0, VOCAB, dtype=jnp.int32)
    # a non-trivial attention mask (last two tokens of batch 1 padded)
    attention_mask = jnp.ones((B, S), jnp.float32).at[1, -2:].set(0.0)

    hidden, out_mask = t5_stack_forward(params, input_ids, attention_mask)
    hidden = jax.block_until_ready(hidden)

    ref_hidden, _ = _ref_forward(params, input_ids, attention_mask)
    assert hidden.shape == (B, S, D_MODEL)
    # bf16 MXU operands + approx-reciprocal softmax -> looser tolerance vs the f32 ref
    assert jnp.allclose(hidden, ref_hidden, rtol=2e-2, atol=2e-2), "mismatch vs reference"

    print("KERNEL_OK")
</pallas_src>

<mosaic_0001>
module attributes {stable_mosaic.version = 11 : i64} {
  func.func @t5_stack_kernel(%arg0: i32, %arg1: memref<16x32xf32, #tpu.memory_space<vmem>>, %arg2: memref<1x4x16x16xf32, #tpu.memory_space<vmem>>, %arg3: memref<2x1x32xf32, #tpu.memory_space<vmem>>, %arg4: memref<2x32x96xbf16, #tpu.memory_space<vmem>>, %arg5: memref<2x32x32xbf16, #tpu.memory_space<vmem>>, %arg6: memref<2x1x32xf32, #tpu.memory_space<vmem>>, %arg7: memref<2x32x128xbf16, #tpu.memory_space<vmem>>, %arg8: memref<2x64x32xbf16, #tpu.memory_space<vmem>>, %arg9: memref<1x32xf32, #tpu.memory_space<vmem>>, %arg10: memref<16x32xf32, #tpu.memory_space<vmem>>) attributes {dimension_semantics = [#tpu.dimension_semantics<parallel>], iteration_bounds = array<i64: 1>, scalar_prefetch = 0 : i64, scratch_operands = 0 : i64, tpu.core_type = #tpu.core_type<tc>, window_params = [{transform_indices = @transform_0, window_bounds = array<i64: 16, 32>}, {transform_indices = @transform_1, window_bounds = array<i64: 1, 4, 16, 16>}, {pipeline_mode = #tpu.pipeline_mode<synchronous>, transform_indices = @transform_2, window_bounds = array<i64: 2, 1, 32>}, {pipeline_mode = #tpu.pipeline_mode<synchronous>, transform_indices = @transform_3, window_bounds = array<i64: 2, 32, 96>}, {pipeline_mode = #tpu.pipeline_mode<synchronous>, transform_indices = @transform_4, window_bounds = array<i64: 2, 32, 32>}, {pipeline_mode = #tpu.pipeline_mode<synchronous>, transform_indices = @transform_5, window_bounds = array<i64: 2, 1, 32>}, {pipeline_mode = #tpu.pipeline_mode<synchronous>, transform_indices = @transform_6, window_bounds = array<i64: 2, 32, 128>}, {pipeline_mode = #tpu.pipeline_mode<synchronous>, transform_indices = @transform_7, window_bounds = array<i64: 2, 64, 32>}, {pipeline_mode = #tpu.pipeline_mode<synchronous>, transform_indices = @transform_8, window_bounds = array<i64: 1, 32>}, {transform_indices = @transform_9, window_bounds = array<i64: 16, 32>}]} {
    %c0 = arith.constant 0 : index
    %c0_0 = arith.constant 0 : index
    %0 = vector.load %arg1[%c0, %c0_0] : memref<16x32xf32, #tpu.memory_space<vmem>>, vector<16x32xf32>
    %c0_1 = arith.constant 0 : index
    %c0_2 = arith.constant 0 : index
    %c0_3 = arith.constant 0 : index
    %c0_4 = arith.constant 0 : index
    %1 = vector.load %arg2[%c0_1, %c0_2, %c0_3, %c0_4] : memref<1x4x16x16xf32, #tpu.memory_space<vmem>>, vector<1x4x16x16xf32>
    %2 = vector.shape_cast %1 : vector<1x4x16x16xf32> to vector<4x16x16xf32>
    %c0_5 = arith.constant 0 : index
    %c0_6 = arith.constant 0 : index
    %c0_7 = arith.constant 0 : index
    %3 = vector.load %arg4[%c0_5, %c0_6, %c0_7] : memref<2x32x96xbf16, #tpu.memory_space<vmem>>, vector<1x32x96xbf16>
    %4 = vector.shape_cast %3 : vector<1x32x96xbf16> to vector<32x96xbf16>
    %c0_8 = arith.constant 0 : index
    %c0_9 = arith.constant 0 : index
    %c0_10 = arith.constant 0 : index
    %5 = vector.load %arg5[%c0_8, %c0_9, %c0_10] : memref<2x32x32xbf16, #tpu.memory_space<vmem>>, vector<1x32x32xbf16>
    %6 = vector.shape_cast %5 : vector<1x32x32xbf16> to vector<32x32xbf16>
    %c0_11 = arith.constant 0 : index
    %c0_12 = arith.constant 0 : index
    %c0_13 = arith.constant 0 : index
    %7 = vector.load %arg7[%c0_11, %c0_12, %c0_13] : memref<2x32x128xbf16, #tpu.memory_space<vmem>>, vector<1x32x128xbf16>
    %8 = vector.shape_cast %7 : vector<1x32x128xbf16> to vector<32x128xbf16>
    %c0_14 = arith.constant 0 : index
    %c0_15 = arith.constant 0 : index
    %c0_16 = arith.constant 0 : index
    %9 = vector.load %arg8[%c0_14, %c0_15, %c0_16] : memref<2x64x32xbf16, #tpu.memory_space<vmem>>, vector<1x64x32xbf16>
    %10 = vector.shape_cast %9 : vector<1x64x32xbf16> to vector<64x32xbf16>
    %c0_17 = arith.constant 0 : index
    %c0_18 = arith.constant 0 : index
    %c0_19 = arith.constant 0 : index
    %11 = vector.load %arg3[%c0_17, %c0_18, %c0_19] : memref<2x1x32xf32, #tpu.memory_space<vmem>>, vector<1x1x32xf32>
    %12 = vector.shape_cast %11 : vector<1x1x32xf32> to vector<1x32xf32>
    %13 = arith.mulf %0, %0 : vector<16x32xf32>
    %cst = arith.constant dense<0.000000e+00> : vector<16xf32>
    %14 = vector.multi_reduction <add>, %13, %cst [1] : vector<16x32xf32> to vector<16xf32>
    %15 = vector.shape_cast %14 : vector<16xf32> to vector<16x1xf32>
    %cst_20 = arith.constant 3.200000e+01 : f32
    %16 = vector.broadcast %cst_20 : f32 to vector<16x1xf32>
    %17 = arith.divf %15, %16 : vector<16x1xf32>
    %cst_21 = arith.constant 9.99999997E-7 : f32
    %18 = vector.broadcast %cst_21 : f32 to vector<16x1xf32>
    %19 = arith.addf %17, %18 : vector<16x1xf32>
    %20 = math.rsqrt %19 : vector<16x1xf32>
    %21 = vector.broadcast %20 : vector<16x1xf32> to vector<16x32xf32>
    %22 = arith.mulf %0, %21 : vector<16x32xf32>
    %23 = vector.broadcast %12 : vector<1x32xf32> to vector<16x32xf32>
    %24 = arith.mulf %22, %23 : vector<16x32xf32>
    %25 = arith.truncf %24 : vector<16x32xf32> to vector<16x32xbf16>
    %cst_22 = arith.constant dense<0.000000e+00> : vector<16x96xf32>
    %26 = tpu.matmul %25, %4, %cst_22 {dimension_numbers = #tpu.dot_dimension_numbers<[1], [0], [0], [1], [0, 0, 1, 1], [], []>} : vector<16x32xbf16>, vector<32x96xbf16>, vector<16x96xf32> -> vector<16x96xf32>
    %cst_23 = arith.constant 0.000000e+00 : f32
    %27 = vector.broadcast %cst_23 : f32 to vector<16x32xf32>
    %28 = vector.extract_strided_slice %26 {offsets = [0, 0], sizes = [16, 8], strides = [1, 1]} : vector<16x96xf32> to vector<16x8xf32>
    %29 = arith.truncf %28 : vector<16x8xf32> to vector<16x8xbf16>
    %30 = vector.extract_strided_slice %26 {offsets = [0, 32], sizes = [16, 8], strides = [1, 1]} : vector<16x96xf32> to vector<16x8xf32>
    %31 = arith.truncf %30 : vector<16x8xf32> to vector<16x8xbf16>
    %32 = vector.extract_strided_slice %26 {offsets = [0, 64], sizes = [16, 8], strides = [1, 1]} : vector<16x96xf32> to vector<16x8xf32>
    %33 = arith.truncf %32 : vector<16x8xf32> to vector<16x8xbf16>
    %34 = tpu.transpose %31, [1, 0] : vector<16x8xbf16> -> vector<8x16xbf16>
    %cst_24 = arith.constant dense<0.000000e+00> : vector<16x16xf32>
    %35 = tpu.matmul %29, %34, %cst_24 {dimension_numbers = #tpu.dot_dimension_numbers<[1], [0], [0], [1], [0, 0, 1, 1], [], []>} : vector<16x8xbf16>, vector<8x16xbf16>, vector<16x16xf32> -> vector<16x16xf32>
    %36 = vector.extract_strided_slice %2 {offsets = [0, 0, 0], sizes = [1, 16, 16], strides = [1, 1, 1]} : vector<4x16x16xf32> to vector<1x16x16xf32>
    %37 = vector.shape_cast %36 : vector<1x16x16xf32> to vector<16x16xf32>
    %38 = arith.addf %35, %37 : vector<16x16xf32>
    %cst_25 = arith.constant dense<0xFF800000> : vector<16xf32>
    %39 = vector.multi_reduction <maximumf>, %38, %cst_25 [1] : vector<16x16xf32> to vector<16xf32>
    %40 = vector.shape_cast %39 : vector<16xf32> to vector<16x1xf32>
    %41 = vector.broadcast %40 : vector<16x1xf32> to vector<16x16xf32>
    %42 = arith.subf %38, %41 : vector<16x16xf32>
    %43 = math.exp %42 : vector<16x16xf32>
    %cst_26 = arith.constant dense<0.000000e+00> : vector<16xf32>
    %44 = vector.multi_reduction <add>, %43, %cst_26 [1] : vector<16x16xf32> to vector<16xf32>
    %45 = vector.shape_cast %44 : vector<16xf32> to vector<16x1xf32>
    %46 = tpu.reciprocal %45 {approx = true} : vector<16x1xf32> -> vector<16x1xf32>
    %47 = vector.broadcast %46 : vector<16x1xf32> to vector<16x16xf32>
    %48 = arith.mulf %43, %47 : vector<16x16xf32>
    %49 = arith.truncf %48 : vector<16x16xf32> to vector<16x16xbf16>
    %cst_27 = arith.constant dense<0.000000e+00> : vector<16x8xf32>
    %50 = tpu.matmul %49, %33, %cst_27 {dimension_numbers = #tpu.dot_dimension_numbers<[1], [0], [0], [1], [0, 0, 1, 1], [], []>} : vector<16x16xbf16>, vector<16x8xbf16>, vector<16x8xf32> -> vector<16x8xf32>
    %51 = arith.truncf %50 : vector<16x8xf32> to vector<16x8xbf16>
    %52 = vector.extract_strided_slice %6 {offsets = [0, 0], sizes = [8, 32], strides = [1, 1]} : vector<32x32xbf16> to vector<8x32xbf16>
    %cst_28 = arith.constant dense<0.000000e+00> : vector<16x32xf32>
    %53 = tpu.matmul %51, %52, %cst_28 {dimension_numbers = #tpu.dot_dimension_numbers<[1], [0], [0], [1], [0, 0, 1, 1], [], []>} : vector<16x8xbf16>, vector<8x32xbf16>, vector<16x32xf32> -> vector<16x32xf32>
    %54 = arith.addf %27, %53 : vector<16x32xf32>
    %55 = vector.extract_strided_slice %26 {offsets = [0, 8], sizes = [16, 8], strides = [1, 1]} : vector<16x96xf32> to vector<16x8xf32>
    %56 = arith.truncf %55 : vector<16x8xf32> to vector<16x8xbf16>
    %57 = vector.extract_strided_slice %26 {offsets = [0, 40], sizes = [16, 8], strides = [1, 1]} : vector<16x96xf32> to vector<16x8xf32>
    %58 = arith.truncf %57 : vector<16x8xf32> to vector<16x8xbf16>
    %59 = vector.extract_strided_slice %26 {offsets = [0, 72], sizes = [16, 8], strides = [1, 1]} : vector<16x96xf32> to vector<16x8xf32>
    %60 = arith.truncf %59 : vector<16x8xf32> to vector<16x8xbf16>
    %61 = tpu.transpose %58, [1, 0] : vector<16x8xbf16> -> vector<8x16xbf16>
    %cst_29 = arith.constant dense<0.000000e+00> : vector<16x16xf32>
    %62 = tpu.matmul %56, %61, %cst_29 {dimension_numbers = #tpu.dot_dimension_numbers<[1], [0], [0], [1], [0, 0, 1, 1], [], []>} : vector<16x8xbf16>, vector<8x16xbf16>, vector<16x16xf32> -> vector<16x16xf32>
    %63 = vector.extract_strided_slice %2 {offsets = [1, 0, 0], sizes = [1, 16, 16], strides = [1, 1, 1]} : vector<4x16x16xf32> to vector<1x16x16xf32>
    %64 = vector.shape_cast %63 : vector<1x16x16xf32> to vector<16x16xf32>
    %65 = arith.addf %62, %64 : vector<16x16xf32>
    %cst_30 = arith.constant dense<0xFF800000> : vector<16xf32>
    %66 = vector.multi_reduction <maximumf>, %65, %cst_30 [1] : vector<16x16xf32> to vector<16xf32>
    %67 = vector.shape_cast %66 : vector<16xf32> to vector<16x1xf32>
    %68 = vector.broadcast %67 : vector<16x1xf32> to vector<16x16xf32>
    %69 = arith.subf %65, %68 : vector<16x16xf32>
    %70 = math.exp %69 : vector<16x16xf32>
    %cst_31 = arith.constant dense<0.000000e+00> : vector<16xf32>
    %71 = vector.multi_reduction <add>, %70, %cst_31 [1] : vector<16x16xf32> to vector<16xf32>
    %72 = vector.shape_cast %71 : vector<16xf32> to vector<16x1xf32>
    %73 = tpu.reciprocal %72 {approx = true} : vector<16x1xf32> -> vector<16x1xf32>
    %74 = vector.broadcast %73 : vector<16x1xf32> to vector<16x16xf32>
    %75 = arith.mulf %70, %74 : vector<16x16xf32>
    %76 = arith.truncf %75 : vector<16x16xf32> to vector<16x16xbf16>
    %cst_32 = arith.constant dense<0.000000e+00> : vector<16x8xf32>
    %77 = tpu.matmul %76, %60, %cst_32 {dimension_numbers = #tpu.dot_dimension_numbers<[1], [0], [0], [1], [0, 0, 1, 1], [], []>} : vector<16x16xbf16>, vector<16x8xbf16>, vector<16x8xf32> -> vector<16x8xf32>
    %78 = arith.truncf %77 : vector<16x8xf32> to vector<16x8xbf16>
    %79 = vector.extract_strided_slice %6 {offsets = [8, 0], sizes = [8, 32], strides = [1, 1]} : vector<32x32xbf16> to vector<8x32xbf16>
    %cst_33 = arith.constant dense<0.000000e+00> : vector<16x32xf32>
    %80 = tpu.matmul %78, %79, %cst_33 {dimension_numbers = #tpu.dot_dimension_numbers<[1], [0], [0], [1], [0, 0, 1, 1], [], []>} : vector<16x8xbf16>, vector<8x32xbf16>, vector<16x32xf32> -> vector<16x32xf32>
    %81 = arith.addf %54, %80 : vector<16x32xf32>
    %82 = vector.extract_strided_slice %26 {offsets = [0, 16], sizes = [16, 8], strides = [1, 1]} : vector<16x96xf32> to vector<16x8xf32>
    %83 = arith.truncf %82 : vector<16x8xf32> to vector<16x8xbf16>
    %84 = vector.extract_strided_slice %26 {offsets = [0, 48], sizes = [16, 8], strides = [1, 1]} : vector<16x96xf32> to vector<16x8xf32>
    %85 = arith.truncf %84 : vector<16x8xf32> to vector<16x8xbf16>
    %86 = vector.extract_strided_slice %26 {offsets = [0, 80], sizes = [16, 8], strides = [1, 1]} : vector<16x96xf32> to vector<16x8xf32>
    %87 = arith.truncf %86 : vector<16x8xf32> to vector<16x8xbf16>
    %88 = tpu.transpose %85, [1, 0] : vector<16x8xbf16> -> vector<8x16xbf16>
    %cst_34 = arith.constant dense<0.000000e+00> : vector<16x16xf32>
    %89 = tpu.matmul %83, %88, %cst_34 {dimension_numbers = #tpu.dot_dimension_numbers<[1], [0], [0], [1], [0, 0, 1, 1], [], []>} : vector<16x8xbf16>, vector<8x16xbf16>, vector<16x16xf32> -> vector<16x16xf32>
    %90 = vector.extract_strided_slice %2 {offsets = [2, 0, 0], sizes = [1, 16, 16], strides = [1, 1, 1]} : vector<4x16x16xf32> to vector<1x16x16xf32>
    %91 = vector.shape_cast %90 : vector<1x16x16xf32> to vector<16x16xf32>
    %92 = arith.addf %89, %91 : vector<16x16xf32>
    %cst_35 = arith.constant dense<0xFF800000> : vector<16xf32>
    %93 = vector.multi_reduction <maximumf>, %92, %cst_35 [1] : vector<16x16xf32> to vector<16xf32>
    %94 = vector.shape_cast %93 : vector<16xf32> to vector<16x1xf32>
    %95 = vector.broadcast %94 : vector<16x1xf32> to vector<16x16xf32>
    %96 = arith.subf %92, %95 : vector<16x16xf32>
    %97 = math.exp %96 : vector<16x16xf32>
    %cst_36 = arith.constant dense<0.000000e+00> : vector<16xf32>
    %98 = vector.multi_reduction <add>, %97, %cst_36 [1] : vector<16x16xf32> to vector<16xf32>
    %99 = vector.shape_cast %98 : vector<16xf32> to vector<16x1xf32>
    %100 = tpu.reciprocal %99 {approx = true} : vector<16x1xf32> -> vector<16x1xf32>
    %101 = vector.broadcast %100 : vector<16x1xf32> to vector<16x16xf32>
    %102 = arith.mulf %97, %101 : vector<16x16xf32>
    %103 = arith.truncf %102 : vector<16x16xf32> to vector<16x16xbf16>
    %cst_37 = arith.constant dense<0.000000e+00> : vector<16x8xf32>
    %104 = tpu.matmul %103, %87, %cst_37 {dimension_numbers = #tpu.dot_dimension_numbers<[1], [0], [0], [1], [0, 0, 1, 1], [], []>} : vector<16x16xbf16>, vector<16x8xbf16>, vector<16x8xf32> -> vector<16x8xf32>
    %105 = arith.truncf %104 : vector<16x8xf32> to vector<16x8xbf16>
    %106 = vector.extract_strided_slice %6 {offsets = [16, 0], sizes = [8, 32], strides = [1, 1]} : vector<32x32xbf16> to vector<8x32xbf16>
    %cst_38 = arith.constant dense<0.000000e+00> : vector<16x32xf32>
    %107 = tpu.matmul %105, %106, %cst_38 {dimension_numbers = #tpu.dot_dimension_numbers<[1], [0], [0], [1], [0, 0, 1, 1], [], []>} : vector<16x8xbf16>, vector<8x32xbf16>, vector<16x32xf32> -> vector<16x32xf32>
    %108 = arith.addf %81, %107 : vector<16x32xf32>
    %109 = vector.extract_strided_slice %26 {offsets = [0, 24], sizes = [16, 8], strides = [1, 1]} : vector<16x96xf32> to vector<16x8xf32>
    %110 = arith.truncf %109 : vector<16x8xf32> to vector<16x8xbf16>
    %111 = vector.extract_strided_slice %26 {offsets = [0, 56], sizes = [16, 8], strides = [1, 1]} : vector<16x96xf32> to vector<16x8xf32>
    %112 = arith.truncf %111 : vector<16x8xf32> to vector<16x8xbf16>
    %113 = vector.extract_strided_slice %26 {offsets = [0, 88], sizes = [16, 8], strides = [1, 1]} : vector<16x96xf32> to vector<16x8xf32>
    %114 = arith.truncf %113 : vector<16x8xf32> to vector<16x8xbf16>
    %115 = tpu.transpose %112, [1, 0] : vector<16x8xbf16> -> vector<8x16xbf16>
    %cst_39 = arith.constant dense<0.000000e+00> : vector<16x16xf32>
    %116 = tpu.matmul %110, %115, %cst_39 {dimension_numbers = #tpu.dot_dimension_numbers<[1], [0], [0], [1], [0, 0, 1, 1], [], []>} : vector<16x8xbf16>, vector<8x16xbf16>, vector<16x16xf32> -> vector<16x16xf32>
    %117 = vector.extract_strided_slice %2 {offsets = [3, 0, 0], sizes = [1, 16, 16], strides = [1, 1, 1]} : vector<4x16x16xf32> to vector<1x16x16xf32>
    %118 = vector.shape_cast %117 : vector<1x16x16xf32> to vector<16x16xf32>
    %119 = arith.addf %116, %118 : vector<16x16xf32>
    %cst_40 = arith.constant dense<0xFF800000> : vector<16xf32>
    %120 = vector.multi_reduction <maximumf>, %119, %cst_40 [1] : vector<16x16xf32> to vector<16xf32>
    %121 = vector.shape_cast %120 : vector<16xf32> to vector<16x1xf32>
    %122 = vector.broadcast %121 : vector<16x1xf32> to vector<16x16xf32>
    %123 = arith.subf %119, %122 : vector<16x16xf32>
    %124 = math.exp %123 : vector<16x16xf32>
    %cst_41 = arith.constant dense<0.000000e+00> : vector<16xf32>
    %125 = vector.multi_reduction <add>, %124, %cst_41 [1] : vector<16x16xf32> to vector<16xf32>
    %126 = vector.shape_cast %125 : vector<16xf32> to vector<16x1xf32>
    %127 = tpu.reciprocal %126 {approx = true} : vector<16x1xf32> -> vector<16x1xf32>
    %128 = vector.broadcast %127 : vector<16x1xf32> to vector<16x16xf32>
    %129 = arith.mulf %124, %128 : vector<16x16xf32>
    %130 = arith.truncf %129 : vector<16x16xf32> to vector<16x16xbf16>
    %cst_42 = arith.constant dense<0.000000e+00> : vector<16x8xf32>
    %131 = tpu.matmul %130, %114, %cst_42 {dimension_numbers = #tpu.dot_dimension_numbers<[1], [0], [0], [1], [0, 0, 1, 1], [], []>} : vector<16x16xbf16>, vector<16x8xbf16>, vector<16x8xf32> -> vector<16x8xf32>
    %132 = arith.truncf %131 : vector<16x8xf32> to vector<16x8xbf16>
    %133 = vector.extract_strided_slice %6 {offsets = [24, 0], sizes = [8, 32], strides = [1, 1]} : vector<32x32xbf16> to vector<8x32xbf16>
    %cst_43 = arith.constant dense<0.000000e+00> : vector<16x32xf32>
    %134 = tpu.matmul %132, %133, %cst_43 {dimension_numbers = #tpu.dot_dimension_numbers<[1], [0], [0], [1], [0, 0, 1, 1], [], []>} : vector<16x8xbf16>, vector<8x32xbf16>, vector<16x32xf32> -> vector<16x32xf32>
    %135 = arith.addf %108, %134 : vector<16x32xf32>
    %136 = arith.addf %0, %135 : vector<16x32xf32>
    %c0_44 = arith.constant 0 : index
    %c0_45 = arith.constant 0 : index
    %c0_46 = arith.constant 0 : index
    %137 = vector.load %arg6[%c0_44, %c0_45, %c0_46] : memref<2x1x32xf32, #tpu.memory_space<vmem>>, vector<1x1x32xf32>
    %138 = vector.shape_cast %137 : vector<1x1x32xf32> to vector<1x32xf32>
    %139 = arith.mulf %136, %136 : vector<16x32xf32>
    %cst_47 = arith.constant dense<0.000000e+00> : vector<16xf32>
    %140 = vector.multi_reduction <add>, %139, %cst_47 [1] : vector<16x32xf32> to vector<16xf32>
    %141 = vector.shape_cast %140 : vector<16xf32> to vector<16x1xf32>
    %cst_48 = arith.constant 3.200000e+01 : f32
    %142 = vector.broadcast %cst_48 : f32 to vector<16x1xf32>
    %143 = arith.divf %141, %142 : vector<16x1xf32>
    %cst_49 = arith.constant 9.99999997E-7 : f32
    %144 = vector.broadcast %cst_49 : f32 to vector<16x1xf32>
    %145 = arith.addf %143, %144 : vector<16x1xf32>
    %146 = math.rsqrt %145 : vector<16x1xf32>
    %147 = vector.broadcast %146 : vector<16x1xf32> to vector<16x32xf32>
    %148 = arith.mulf %136, %147 : vector<16x32xf32>
    %149 = vector.broadcast %138 : vector<1x32xf32> to vector<16x32xf32>
    %150 = arith.mulf %148, %149 : vector<16x32xf32>
    %151 = arith.truncf %150 : vector<16x32xf32> to vector<16x32xbf16>
    %cst_50 = arith.constant dense<0.000000e+00> : vector<16x128xf32>
    %152 = tpu.matmul %151, %8, %cst_50 {dimension_numbers = #tpu.dot_dimension_numbers<[1], [0], [0], [1], [0, 0, 1, 1], [], []>} : vector<16x32xbf16>, vector<32x128xbf16>, vector<16x128xf32> -> vector<16x128xf32>
    %153 = vector.extract_strided_slice %152 {offsets = [0, 0], sizes = [16, 64], strides = [1, 1]} : vector<16x128xf32> to vector<16x64xf32>
    %cst_51 = arith.constant 5.000000e-01 : f32
    %154 = vector.broadcast %cst_51 : f32 to vector<16x64xf32>
    %155 = arith.mulf %154, %153 : vector<16x64xf32>
    %cst_52 = arith.constant 4.471500e-02 : f32
    %156 = vector.broadcast %cst_52 : f32 to vector<16x64xf32>
    %157 = arith.mulf %156, %153 : vector<16x64xf32>
    %158 = arith.mulf %157, %153 : vector<16x64xf32>
    %159 = arith.mulf %158, %153 : vector<16x64xf32>
    %160 = arith.addf %153, %159 : vector<16x64xf32>
    %cst_53 = arith.constant 0.797884583 : f32
    %161 = vector.broadcast %cst_53 : f32 to vector<16x64xf32>
    %162 = arith.mulf %161, %160 : vector<16x64xf32>
    %163 = math.tanh %162 : vector<16x64xf32>
    %cst_54 = arith.constant 1.000000e+00 : f32
    %164 = vector.broadcast %cst_54 : f32 to vector<16x64xf32>
    %165 = arith.addf %164, %163 : vector<16x64xf32>
    %166 = arith.mulf %155, %165 : vector<16x64xf32>
    %167 = vector.extract_strided_slice %152 {offsets = [0, 64], sizes = [16, 64], strides = [1, 1]} : vector<16x128xf32> to vector<16x64xf32>
    %168 = arith.mulf %166, %167 : vector<16x64xf32>
    %169 = arith.truncf %168 : vector<16x64xf32> to vector<16x64xbf16>
    %cst_55 = arith.constant dense<0.000000e+00> : vector<16x32xf32>
    %170 = tpu.matmul %169, %10, %cst_55 {dimension_numbers = #tpu.dot_dimension_numbers<[1], [0], [0], [1], [0, 0, 1, 1], [], []>} : vector<16x64xbf16>, vector<64x32xbf16>, vector<16x32xf32> -> vector<16x32xf32>
    %171 = arith.addf %136, %170 : vector<16x32xf32>
    %c1 = arith.constant 1 : index
    %c0_56 = arith.constant 0 : index
    %c0_57 = arith.constant 0 : index
    %172 = vector.load %arg4[%c1, %c0_56, %c0_57] : memref<2x32x96xbf16, #tpu.memory_space<vmem>>, vector<1x32x96xbf16>
    %173 = vector.shape_cast %172 : vector<1x32x96xbf16> to vector<32x96xbf16>
    %c1_58 = arith.constant 1 : index
    %c0_59 = arith.constant 0 : index
    %c0_60 = arith.constant 0 : index
    %174 = vector.load %arg5[%c1_58, %c0_59, %c0_60] : memref<2x32x32xbf16, #tpu.memory_space<vmem>>, vector<1x32x32xbf16>
    %175 = vector.shape_cast %174 : vector<1x32x32xbf16> to vector<32x32xbf16>
    %c1_61 = arith.constant 1 : index
    %c0_62 = arith.constant 0 : index
    %c0_63 = arith.constant 0 : index
    %176 = vector.load %arg7[%c1_61, %c0_62, %c0_63] : memref<2x32x128xbf16, #tpu.memory_space<vmem>>, vector<1x32x128xbf16>
    %177 = vector.shape_cast %176 : vector<1x32x128xbf16> to vector<32x128xbf16>
    %c1_64 = arith.constant 1 : index
    %c0_65 = arith.constant 0 : index
    %c0_66 = arith.constant 0 : index
    %178 = vector.load %arg8[%c1_64, %c0_65, %c0_66] : memref<2x64x32xbf16, #tpu.memory_space<vmem>>, vector<1x64x32xbf16>
    %179 = vector.shape_cast %178 : vector<1x64x32xbf16> to vector<64x32xbf16>
    %c1_67 = arith.constant 1 : index
    %c0_68 = arith.constant 0 : index
    %c0_69 = arith.constant 0 : index
    %180 = vector.load %arg3[%c1_67, %c0_68, %c0_69] : memref<2x1x32xf32, #tpu.memory_space<vmem>>, vector<1x1x32xf32>
    %181 = vector.shape_cast %180 : vector<1x1x32xf32> to vector<1x32xf32>
    %182 = arith.mulf %171, %171 : vector<16x32xf32>
    %cst_70 = arith.constant dense<0.000000e+00> : vector<16xf32>
    %183 = vector.multi_reduction <add>, %182, %cst_70 [1] : vector<16x32xf32> to vector<16xf32>
    %184 = vector.shape_cast %183 : vector<16xf32> to vector<16x1xf32>
    %cst_71 = arith.constant 3.200000e+01 : f32
    %185 = vector.broadcast %cst_71 : f32 to vector<16x1xf32>
    %186 = arith.divf %184, %185 : vector<16x1xf32>
    %cst_72 = arith.constant 9.99999997E-7 : f32
    %187 = vector.broadcast %cst_72 : f32 to vector<16x1xf32>
    %188 = arith.addf %186, %187 : vector<16x1xf32>
    %189 = math.rsqrt %188 : vector<16x1xf32>
    %190 = vector.broadcast %189 : vector<16x1xf32> to vector<16x32xf32>
    %191 = arith.mulf %171, %190 : vector<16x32xf32>
    %192 = vector.broadcast %181 : vector<1x32xf32> to vector<16x32xf32>
    %193 = arith.mulf %191, %192 : vector<16x32xf32>
    %194 = arith.truncf %193 : vector<16x32xf32> to vector<16x32xbf16>
    %cst_73 = arith.constant dense<0.000000e+00> : vector<16x96xf32>
    %195 = tpu.matmul %194, %173, %cst_73 {dimension_numbers = #tpu.dot_dimension_numbers<[1], [0], [0], [1], [0, 0, 1, 1], [], []>} : vector<16x32xbf16>, vector<32x96xbf16>, vector<16x96xf32> -> vector<16x96xf32>
    %cst_74 = arith.constant 0.000000e+00 : f32
    %196 = vector.broadcast %cst_74 : f32 to vector<16x32xf32>
    %197 = vector.extract_strided_slice %195 {offsets = [0, 0], sizes = [16, 8], strides = [1, 1]} : vector<16x96xf32> to vector<16x8xf32>
    %198 = arith.truncf %197 : vector<16x8xf32> to vector<16x8xbf16>
    %199 = vector.extract_strided_slice %195 {offsets = [0, 32], sizes = [16, 8], strides = [1, 1]} : vector<16x96xf32> to vector<16x8xf32>
    %200 = arith.truncf %199 : vector<16x8xf32> to vector<16x8xbf16>
    %201 = vector.extract_strided_slice %195 {offsets = [0, 64], sizes = [16, 8], strides = [1, 1]} : vector<16x96xf32> to vector<16x8xf32>
    %202 = arith.truncf %201 : vector<16x8xf32> to vector<16x8xbf16>
    %203 = tpu.transpose %200, [1, 0] : vector<16x8xbf16> -> vector<8x16xbf16>
    %cst_75 = arith.constant dense<0.000000e+00> : vector<16x16xf32>
    %204 = tpu.matmul %198, %203, %cst_75 {dimension_numbers = #tpu.dot_dimension_numbers<[1], [0], [0], [1], [0, 0, 1, 1], [], []>} : vector<16x8xbf16>, vector<8x16xbf16>, vector<16x16xf32> -> vector<16x16xf32>
    %205 = vector.extract_strided_slice %2 {offsets = [0, 0, 0], sizes = [1, 16, 16], strides = [1, 1, 1]} : vector<4x16x16xf32> to vector<1x16x16xf32>
    %206 = vector.shape_cast %205 : vector<1x16x16xf32> to vector<16x16xf32>
    %207 = arith.addf %204, %206 : vector<16x16xf32>
    %cst_76 = arith.constant dense<0xFF800000> : vector<16xf32>
    %208 = vector.multi_reduction <maximumf>, %207, %cst_76 [1] : vector<16x16xf32> to vector<16xf32>
    %209 = vector.shape_cast %208 : vector<16xf32> to vector<16x1xf32>
    %210 = vector.broadcast %209 : vector<16x1xf32> to vector<16x16xf32>
    %211 = arith.subf %207, %210 : vector<16x16xf32>
    %212 = math.exp %211 : vector<16x16xf32>
    %cst_77 = arith.constant dense<0.000000e+00> : vector<16xf32>
    %213 = vector.multi_reduction <add>, %212, %cst_77 [1] : vector<16x16xf32> to vector<16xf32>
    %214 = vector.shape_cast %213 : vector<16xf32> to vector<16x1xf32>
    %215 = tpu.reciprocal %214 {approx = true} : vector<16x1xf32> -> vector<16x1xf32>
    %216 = vector.broadcast %215 : vector<16x1xf32> to vector<16x16xf32>
    %217 = arith.mulf %212, %216 : vector<16x16xf32>
    %218 = arith.truncf %217 : vector<16x16xf32> to vector<16x16xbf16>
    %cst_78 = arith.constant dense<0.000000e+00> : vector<16x8xf32>
    %219 = tpu.matmul %218, %202, %cst_78 {dimension_numbers = #tpu.dot_dimension_numbers<[1], [0], [0], [1], [0, 0, 1, 1], [], []>} : vector<16x16xbf16>, vector<16x8xbf16>, vector<16x8xf32> -> vector<16x8xf32>
    %220 = arith.truncf %219 : vector<16x8xf32> to vector<16x8xbf16>
    %221 = vector.extract_strided_slice %175 {offsets = [0, 0], sizes = [8, 32], strides = [1, 1]} : vector<32x32xbf16> to vector<8x32xbf16>
    %cst_79 = arith.constant dense<0.000000e+00> : vector<16x32xf32>
    %222 = tpu.matmul %220, %221, %cst_79 {dimension_numbers = #tpu.dot_dimension_numbers<[1], [0], [0], [1], [0, 0, 1, 1], [], []>} : vector<16x8xbf16>, vector<8x32xbf16>, vector<16x32xf32> -> vector<16x32xf32>
    %223 = arith.addf %196, %222 : vector<16x32xf32>
    %224 = vector.extract_strided_slice %195 {offsets = [0, 8], sizes = [16, 8], strides = [1, 1]} : vector<16x96xf32> to vector<16x8xf32>
    %225 = arith.truncf %224 : vector<16x8xf32> to vector<16x8xbf16>
    %226 = vector.extract_strided_slice %195 {offsets = [0, 40], sizes = [16, 8], strides = [1, 1]} : vector<16x96xf32> to vector<16x8xf32>
    %227 = arith.truncf %226 : vector<16x8xf32> to vector<16x8xbf16>
    %228 = vector.extract_strided_slice %195 {offsets = [0, 72], sizes = [16, 8], strides = [1, 1]} : vector<16x96xf32> to vector<16x8xf32>
    %229 = arith.truncf %228 : vector<16x8xf32> to vector<16x8xbf16>
    %230 = tpu.transpose %227, [1, 0] : vector<16x8xbf16> -> vector<8x16xbf16>
    %cst_80 = arith.constant dense<0.000000e+00> : vector<16x16xf32>
    %231 = tpu.matmul %225, %230, %cst_80 {dimension_numbers = #tpu.dot_dimension_numbers<[1], [0], [0], [1], [0, 0, 1, 1], [], []>} : vector<16x8xbf16>, vector<8x16xbf16>, vector<16x16xf32> -> vector<16x16xf32>
    %232 = vector.extract_strided_slice %2 {offsets = [1, 0, 0], sizes = [1, 16, 16], strides = [1, 1, 1]} : vector<4x16x16xf32> to vector<1x16x16xf32>
    %233 = vector.shape_cast %232 : vector<1x16x16xf32> to vector<16x16xf32>
    %234 = arith.addf %231, %233 : vector<16x16xf32>
    %cst_81 = arith.constant dense<0xFF800000> : vector<16xf32>
    %235 = vector.multi_reduction <maximumf>, %234, %cst_81 [1] : vector<16x16xf32> to vector<16xf32>
    %236 = vector.shape_cast %235 : vector<16xf32> to vector<16x1xf32>
    %237 = vector.broadcast %236 : vector<16x1xf32> to vector<16x16xf32>
    %238 = arith.subf %234, %237 : vector<16x16xf32>
    %239 = math.exp %238 : vector<16x16xf32>
    %cst_82 = arith.constant dense<0.000000e+00> : vector<16xf32>
    %240 = vector.multi_reduction <add>, %239, %cst_82 [1] : vector<16x16xf32> to vector<16xf32>
    %241 = vector.shape_cast %240 : vector<16xf32> to vector<16x1xf32>
    %242 = tpu.reciprocal %241 {approx = true} : vector<16x1xf32> -> vector<16x1xf32>
    %243 = vector.broadcast %242 : vector<16x1xf32> to vector<16x16xf32>
    %244 = arith.mulf %239, %243 : vector<16x16xf32>
    %245 = arith.truncf %244 : vector<16x16xf32> to vector<16x16xbf16>
    %cst_83 = arith.constant dense<0.000000e+00> : vector<16x8xf32>
    %246 = tpu.matmul %245, %229, %cst_83 {dimension_numbers = #tpu.dot_dimension_numbers<[1], [0], [0], [1], [0, 0, 1, 1], [], []>} : vector<16x16xbf16>, vector<16x8xbf16>, vector<16x8xf32> -> vector<16x8xf32>
    %247 = arith.truncf %246 : vector<16x8xf32> to vector<16x8xbf16>
    %248 = vector.extract_strided_slice %175 {offsets = [8, 0], sizes = [8, 32], strides = [1, 1]} : vector<32x32xbf16> to vector<8x32xbf16>
    %cst_84 = arith.constant dense<0.000000e+00> : vector<16x32xf32>
    %249 = tpu.matmul %247, %248, %cst_84 {dimension_numbers = #tpu.dot_dimension_numbers<[1], [0], [0], [1], [0, 0, 1, 1], [], []>} : vector<16x8xbf16>, vector<8x32xbf16>, vector<16x32xf32> -> vector<16x32xf32>
    %250 = arith.addf %223, %249 : vector<16x32xf32>
    %251 = vector.extract_strided_slice %195 {offsets = [0, 16], sizes = [16, 8], strides = [1, 1]} : vector<16x96xf32> to vector<16x8xf32>
    %252 = arith.truncf %251 : vector<16x8xf32> to vector<16x8xbf16>
    %253 = vector.extract_strided_slice %195 {offsets = [0, 48], sizes = [16, 8], strides = [1, 1]} : vector<16x96xf32> to vector<16x8xf32>
    %254 = arith.truncf %253 : vector<16x8xf32> to vector<16x8xbf16>
    %255 = vector.extract_strided_slice %195 {offsets = [0, 80], sizes = [16, 8], strides = [1, 1]} : vector<16x96xf32> to vector<16x8xf32>
    %256 = arith.truncf %255 : vector<16x8xf32> to vector<16x8xbf16>
    %257 = tpu.transpose %254, [1, 0] : vector<16x8xbf16> -> vector<8x16xbf16>
    %cst_85 = arith.constant dense<0.000000e+00> : vector<16x16xf32>
    %258 = tpu.matmul %252, %257, %cst_85 {dimension_numbers = #tpu.dot_dimension_numbers<[1], [0], [0], [1], [0, 0, 1, 1], [], []>} : vector<16x8xbf16>, vector<8x16xbf16>, vector<16x16xf32> -> vector<16x16xf32>
    %259 = vector.extract_strided_slice %2 {offsets = [2, 0, 0], sizes = [1, 16, 16], strides = [1, 1, 1]} : vector<4x16x16xf32> to vector<1x16x16xf32>
    %260 = vector.shape_cast %259 : vector<1x16x16xf32> to vector<16x16xf32>
    %261 = arith.addf %258, %260 : vector<16x16xf32>
    %cst_86 = arith.constant dense<0xFF800000> : vector<16xf32>
    %262 = vector.multi_reduction <maximumf>, %261, %cst_86 [1] : vector<16x16xf32> to vector<16xf32>
    %263 = vector.shape_cast %262 : vector<16xf32> to vector<16x1xf32>
    %264 = vector.broadcast %263 : vector<16x1xf32> to vector<16x16xf32>
    %265 = arith.subf %261, %264 : vector<16x16xf32>
    %266 = math.exp %265 : vector<16x16xf32>
    %cst_87 = arith.constant dense<0.000000e+00> : vector<16xf32>
    %267 = vector.multi_reduction <add>, %266, %cst_87 [1] : vector<16x16xf32> to vector<16xf32>
    %268 = vector.shape_cast %267 : vector<16xf32> to vector<16x1xf32>
    %269 = tpu.reciprocal %268 {approx = true} : vector<16x1xf32> -> vector<16x1xf32>
    %270 = vector.broadcast %269 : vector<16x1xf32> to vector<16x16xf32>
    %271 = arith.mulf %266, %270 : vector<16x16xf32>
    %272 = arith.truncf %271 : vector<16x16xf32> to vector<16x16xbf16>
    %cst_88 = arith.constant dense<0.000000e+00> : vector<16x8xf32>
    %273 = tpu.matmul %272, %256, %cst_88 {dimension_numbers = #tpu.dot_dimension_numbers<[1], [0], [0], [1], [0, 0, 1, 1], [], []>} : vector<16x16xbf16>, vector<16x8xbf16>, vector<16x8xf32> -> vector<16x8xf32>
    %274 = arith.truncf %273 : vector<16x8xf32> to vector<16x8xbf16>
    %275 = vector.extract_strided_slice %175 {offsets = [16, 0], sizes = [8, 32], strides = [1, 1]} : vector<32x32xbf16> to vector<8x32xbf16>
    %cst_89 = arith.constant dense<0.000000e+00> : vector<16x32xf32>
    %276 = tpu.matmul %274, %275, %cst_89 {dimension_numbers = #tpu.dot_dimension_numbers<[1], [0], [0], [1], [0, 0, 1, 1], [], []>} : vector<16x8xbf16>, vector<8x32xbf16>, vector<16x32xf32> -> vector<16x32xf32>
    %277 = arith.addf %250, %276 : vector<16x32xf32>
    %278 = vector.extract_strided_slice %195 {offsets = [0, 24], sizes = [16, 8], strides = [1, 1]} : vector<16x96xf32> to vector<16x8xf32>
    %279 = arith.truncf %278 : vector<16x8xf32> to vector<16x8xbf16>
    %280 = vector.extract_strided_slice %195 {offsets = [0, 56], sizes = [16, 8], strides = [1, 1]} : vector<16x96xf32> to vector<16x8xf32>
    %281 = arith.truncf %280 : vector<16x8xf32> to vector<16x8xbf16>
    %282 = vector.extract_strided_slice %195 {offsets = [0, 88], sizes = [16, 8], strides = [1, 1]} : vector<16x96xf32> to vector<16x8xf32>
    %283 = arith.truncf %282 : vector<16x8xf32> to vector<16x8xbf16>
    %284 = tpu.transpose %281, [1, 0] : vector<16x8xbf16> -> vector<8x16xbf16>
    %cst_90 = arith.constant dense<0.000000e+00> : vector<16x16xf32>
    %285 = tpu.matmul %279, %284, %cst_90 {dimension_numbers = #tpu.dot_dimension_numbers<[1], [0], [0], [1], [0, 0, 1, 1], [], []>} : vector<16x8xbf16>, vector<8x16xbf16>, vector<16x16xf32> -> vector<16x16xf32>
    %286 = vector.extract_strided_slice %2 {offsets = [3, 0, 0], sizes = [1, 16, 16], strides = [1, 1, 1]} : vector<4x16x16xf32> to vector<1x16x16xf32>
    %287 = vector.shape_cast %286 : vector<1x16x16xf32> to vector<16x16xf32>
    %288 = arith.addf %285, %287 : vector<16x16xf32>
    %cst_91 = arith.constant dense<0xFF800000> : vector<16xf32>
    %289 = vector.multi_reduction <maximumf>, %288, %cst_91 [1] : vector<16x16xf32> to vector<16xf32>
    %290 = vector.shape_cast %289 : vector<16xf32> to vector<16x1xf32>
    %291 = vector.broadcast %290 : vector<16x1xf32> to vector<16x16xf32>
    %292 = arith.subf %288, %291 : vector<16x16xf32>
    %293 = math.exp %292 : vector<16x16xf32>
    %cst_92 = arith.constant dense<0.000000e+00> : vector<16xf32>
    %294 = vector.multi_reduction <add>, %293, %cst_92 [1] : vector<16x16xf32> to vector<16xf32>
    %295 = vector.shape_cast %294 : vector<16xf32> to vector<16x1xf32>
    %296 = tpu.reciprocal %295 {approx = true} : vector<16x1xf32> -> vector<16x1xf32>
    %297 = vector.broadcast %296 : vector<16x1xf32> to vector<16x16xf32>
    %298 = arith.mulf %293, %297 : vector<16x16xf32>
    %299 = arith.truncf %298 : vector<16x16xf32> to vector<16x16xbf16>
    %cst_93 = arith.constant dense<0.000000e+00> : vector<16x8xf32>
    %300 = tpu.matmul %299, %283, %cst_93 {dimension_numbers = #tpu.dot_dimension_numbers<[1], [0], [0], [1], [0, 0, 1, 1], [], []>} : vector<16x16xbf16>, vector<16x8xbf16>, vector<16x8xf32> -> vector<16x8xf32>
    %301 = arith.truncf %300 : vector<16x8xf32> to vector<16x8xbf16>
    %302 = vector.extract_strided_slice %175 {offsets = [24, 0], sizes = [8, 32], strides = [1, 1]} : vector<32x32xbf16> to vector<8x32xbf16>
    %cst_94 = arith.constant dense<0.000000e+00> : vector<16x32xf32>
    %303 = tpu.matmul %301, %302, %cst_94 {dimension_numbers = #tpu.dot_dimension_numbers<[1], [0], [0], [1], [0, 0, 1, 1], [], []>} : vector<16x8xbf16>, vector<8x32xbf16>, vector<16x32xf32> -> vector<16x32xf32>
    %304 = arith.addf %277, %303 : vector<16x32xf32>
    %305 = arith.addf %171, %304 : vector<16x32xf32>
    %c1_95 = arith.constant 1 : index
    %c0_96 = arith.constant 0 : index
    %c0_97 = arith.constant 0 : index
    %306 = vector.load %arg6[%c1_95, %c0_96, %c0_97] : memref<2x1x32xf32, #tpu.memory_space<vmem>>, vector<1x1x32xf32>
    %307 = vector.shape_cast %306 : vector<1x1x32xf32> to vector<1x32xf32>
    %308 = arith.mulf %305, %305 : vector<16x32xf32>
    %cst_98 = arith.constant dense<0.000000e+00> : vector<16xf32>
    %309 = vector.multi_reduction <add>, %308, %cst_98 [1] : vector<16x32xf32> to vector<16xf32>
    %310 = vector.shape_cast %309 : vector<16xf32> to vector<16x1xf32>
    %cst_99 = arith.constant 3.200000e+01 : f32
    %311 = vector.broadcast %cst_99 : f32 to vector<16x1xf32>
    %312 = arith.divf %310, %311 : vector<16x1xf32>
    %cst_100 = arith.constant 9.99999997E-7 : f32
    %313 = vector.broadcast %cst_100 : f32 to vector<16x1xf32>
    %314 = arith.addf %312, %313 : vector<16x1xf32>
    %315 = math.rsqrt %314 : vector<16x1xf32>
    %316 = vector.broadcast %315 : vector<16x1xf32> to vector<16x32xf32>
    %317 = arith.mulf %305, %316 : vector<16x32xf32>
    %318 = vector.broadcast %307 : vector<1x32xf32> to vector<16x32xf32>
    %319 = arith.mulf %317, %318 : vector<16x32xf32>
    %320 = arith.truncf %319 : vector<16x32xf32> to vector<16x32xbf16>
    %cst_101 = arith.constant dense<0.000000e+00> : vector<16x128xf32>
    %321 = tpu.matmul %320, %177, %cst_101 {dimension_numbers = #tpu.dot_dimension_numbers<[1], [0], [0], [1], [0, 0, 1, 1], [], []>} : vector<16x32xbf16>, vector<32x128xbf16>, vector<16x128xf32> -> vector<16x128xf32>
    %322 = vector.extract_strided_slice %321 {offsets = [0, 0], sizes = [16, 64], strides = [1, 1]} : vector<16x128xf32> to vector<16x64xf32>
    %cst_102 = arith.constant 5.000000e-01 : f32
    %323 = vector.broadcast %cst_102 : f32 to vector<16x64xf32>
    %324 = arith.mulf %323, %322 : vector<16x64xf32>
    %cst_103 = arith.constant 4.471500e-02 : f32
    %325 = vector.broadcast %cst_103 : f32 to vector<16x64xf32>
    %326 = arith.mulf %325, %322 : vector<16x64xf32>
    %327 = arith.mulf %326, %322 : vector<16x64xf32>
    %328 = arith.mulf %327, %322 : vector<16x64xf32>
    %329 = arith.addf %322, %328 : vector<16x64xf32>
    %cst_104 = arith.constant 0.797884583 : f32
    %330 = vector.broadcast %cst_104 : f32 to vector<16x64xf32>
    %331 = arith.mulf %330, %329 : vector<16x64xf32>
    %332 = math.tanh %331 : vector<16x64xf32>
    %cst_105 = arith.constant 1.000000e+00 : f32
    %333 = vector.broadcast %cst_105 : f32 to vector<16x64xf32>
    %334 = arith.addf %333, %332 : vector<16x64xf32>
    %335 = arith.mulf %324, %334 : vector<16x64xf32>
    %336 = vector.extract_strided_slice %321 {offsets = [0, 64], sizes = [16, 64], strides = [1, 1]} : vector<16x128xf32> to vector<16x64xf32>
    %337 = arith.mulf %335, %336 : vector<16x64xf32>
    %338 = arith.truncf %337 : vector<16x64xf32> to vector<16x64xbf16>
    %cst_106 = arith.constant dense<0.000000e+00> : vector<16x32xf32>
    %339 = tpu.matmul %338, %179, %cst_106 {dimension_numbers = #tpu.dot_dimension_numbers<[1], [0], [0], [1], [0, 0, 1, 1], [], []>} : vector<16x64xbf16>, vector<64x32xbf16>, vector<16x32xf32> -> vector<16x32xf32>
    %340 = arith.addf %305, %339 : vector<16x32xf32>
    %c0_107 = arith.constant 0 : index
    %c0_108 = arith.constant 0 : index
    %341 = vector.load %arg9[%c0_107, %c0_108] : memref<1x32xf32, #tpu.memory_space<vmem>>, vector<1x32xf32>
    %342 = arith.mulf %340, %340 : vector<16x32xf32>
    %cst_109 = arith.constant dense<0.000000e+00> : vector<16xf32>
    %343 = vector.multi_reduction <add>, %342, %cst_109 [1] : vector<16x32xf32> to vector<16xf32>
    %344 = vector.shape_cast %343 : vector<16xf32> to vector<16x1xf32>
    %cst_110 = arith.constant 3.200000e+01 : f32
    %345 = vector.broadcast %cst_110 : f32 to vector<16x1xf32>
    %346 = arith.divf %344, %345 : vector<16x1xf32>
    %cst_111 = arith.constant 9.99999997E-7 : f32
    %347 = vector.broadcast %cst_111 : f32 to vector<16x1xf32>
    %348 = arith.addf %346, %347 : vector<16x1xf32>
    %349 = math.rsqrt %348 : vector<16x1xf32>
    %350 = vector.broadcast %349 : vector<16x1xf32> to vector<16x32xf32>
    %351 = arith.mulf %340, %350 : vector<16x32xf32>
    %352 = vector.broadcast %341 : vector<1x32xf32> to vector<16x32xf32>
    %353 = arith.mulf %351, %352 : vector<16x32xf32>
    %c0_112 = arith.constant 0 : index
    %c0_113 = arith.constant 0 : index
    %354 = vector.load %arg10[%c0_112, %c0_113] : memref<16x32xf32, #tpu.memory_space<vmem>>, vector<16x32xf32>
    tpu.vector_store %arg10[%c0_112, %c0_113], %353 {strides = array<i32>} : memref<16x32xf32, #tpu.memory_space<vmem>>, vector<16x32xf32>,
    return
  }
  func.func @transform_0(%arg0: i32) -> (i32, i32) {
    %c0_i32 = arith.constant 0 : i32
    %c0_i32_0 = arith.constant 0 : i32
    return %arg0, %c0_i32 : i32, i32
  }
  func.func @transform_1(%arg0: i32) -> (i32, i32, i32, i32) {
    %c0_i32 = arith.constant 0 : i32
    %c0_i32_0 = arith.constant 0 : i32
    %c0_i32_1 = arith.constant 0 : i32
    %c0_i32_2 = arith.constant 0 : i32
    return %arg0, %c0_i32, %c0_i32_0, %c0_i32_1 : i32, i32, i32, i32
  }
  func.func @transform_2(%arg0: i32) -> (i32, i32, i32) {
    %c0_i32 = arith.constant 0 : i32
    %c0_i32_0 = arith.constant 0 : i32
    %c0_i32_1 = arith.constant 0 : i32
    %c0_i32_2 = arith.constant 0 : i32
    return %c0_i32, %c0_i32_0, %c0_i32_1 : i32, i32, i32
  }
  func.func @transform_3(%arg0: i32) -> (i32, i32, i32) {
    %c0_i32 = arith.constant 0 : i32
    %c0_i32_0 = arith.constant 0 : i32
    %c0_i32_1 = arith.constant 0 : i32
    %c0_i32_2 = arith.constant 0 : i32
    return %c0_i32, %c0_i32_0, %c0_i32_1 : i32, i32, i32
  }
  func.func @transform_4(%arg0: i32) -> (i32, i32, i32) {
    %c0_i32 = arith.constant 0 : i32
    %c0_i32_0 = arith.constant 0 : i32
    %c0_i32_1 = arith.constant 0 : i32
    %c0_i32_2 = arith.constant 0 : i32
    return %c0_i32, %c0_i32_0, %c0_i32_1 : i32, i32, i32
  }
  func.func @transform_5(%arg0: i32) -> (i32, i32, i32) {
    %c0_i32 = arith.constant 0 : i32
    %c0_i32_0 = arith.constant 0 : i32
    %c0_i32_1 = arith.constant 0 : i32
    %c0_i32_2 = arith.constant 0 : i32
    return %c0_i32, %c0_i32_0, %c0_i32_1 : i32, i32, i32
  }
  func.func @transform_6(%arg0: i32) -> (i32, i32, i32) {
    %c0_i32 = arith.constant 0 : i32
    %c0_i32_0 = arith.constant 0 : i32
    %c0_i32_1 = arith.constant 0 : i32
    %c0_i32_2 = arith.constant 0 : i32
    return %c0_i32, %c0_i32_0, %c0_i32_1 : i32, i32, i32
  }
  func.func @transform_7(%arg0: i32) -> (i32, i32, i32) {
    %c0_i32 = arith.constant 0 : i32
    %c0_i32_0 = arith.constant 0 : i32
    %c0_i32_1 = arith.constant 0 : i32
    %c0_i32_2 = arith.constant 0 : i32
    return %c0_i32, %c0_i32_0, %c0_i32_1 : i32, i32, i32
  }
  func.func @transform_8(%arg0: i32) -> (i32, i32) {
    %c0_i32 = arith.constant 0 : i32
    %c0_i32_0 = arith.constant 0 : i32
    %c0_i32_1 = arith.constant 0 : i32
    return %c0_i32, %c0_i32_0 : i32, i32
  }
  func.func @transform_9(%arg0: i32) -> (i32, i32) {
    %c0_i32 = arith.constant 0 : i32
    %c0_i32_0 = arith.constant 0 : i32
    return %arg0, %c0_i32 : i32, i32
  }
}

</mosaic_0001>

<llo_original>
// kernel: tpu_custom_call.1
$region0: #{tpu_custom_call.1}
  #allocation0 [shape = 'u32[]', space=smem, size = 0x4, offset = 0x4, fixed_abs, tag = 'smem constant byte address 0x4 - core index']
  #allocation1 [shape = 'u32[72,128]{1,0:T(1,128)}', space=vmem, size = 0x9000, scoped, tag = 'internal scratch']
  %s0 = inlined_call_operand.hbm [shape: f32[16,32], index: 0, kind: input, shape index: {}]
  %s1 = inlined_call_operand.vmem [shape: f32[1,4,16,16], index: 1, kind: input, shape index: {}]
  %s2 = inlined_call_operand.hbm [shape: f32[2,1,32], index: 2, kind: input, shape index: {}]
  %s3 = inlined_call_operand.vmem [shape: bf16[2,32,96], index: 3, kind: input, shape index: {}]
  %s4 = inlined_call_operand.hbm [shape: bf16[2,32,32], index: 4, kind: input, shape index: {}]
  %s5 = inlined_call_operand.vmem [shape: f32[2,1,32], index: 5, kind: input, shape index: {}]
  %s6 = inlined_call_operand.hbm [shape: bf16[2,32,128], index: 6, kind: input, shape index: {}]
  %s7 = inlined_call_operand.vmem [shape: bf16[2,64,32], index: 7, kind: input, shape index: {}]
  %s8 = inlined_call_operand.vmem [shape: f32[1,32], index: 8, kind: input, shape index: {}]
  %s9 = inlined_call_operand.hbm [shape: f32[16,32], index: 9, kind: output, shape index: {}]
  %s10 = sld [smem:[#allocation0]]
  $region62: #{tpu_custom_call.1} parent=0
    _
  %s12 = ssub.s32 1, %s10
  %s13 = scalar_select 0, %s12, %s10
  $region1: #{tpu_custom_call.1} parent=0
    #allocation2 [shape = 'u8[8192]{0}', space=vmem, size = 0x2000, scoped, tag = 'input window, operand 0, single buffered']
    #allocation3 [shape = 's32[1]{0}', space=sflag, size = 0x4, scoped, tag = 'scoped memory for tpu_custom_call.1']
    #allocation4 [shape = 's32[1]{0}', space=sflag, size = 0x4, scoped, tag = 'scoped memory for tpu_custom_call.1']
    #allocation5 [shape = 'u8[1024]{0}', space=vmem, size = 0x400, scoped, tag = 'input window, operand 2, single buffered']
    #allocation6 [shape = 's32[1]{0}', space=sflag, size = 0x4, scoped, tag = 'scoped memory for tpu_custom_call.1']
    #allocation7 [shape = 'u8[16384]{0}', space=vmem, size = 0x4000, scoped, tag = 'input window, operand 4, single buffered']
    #allocation8 [shape = 'u8[16384]{0}', space=vmem, size = 0x4000, scoped, tag = 'input window, operand 6, single buffered']
    #allocation9 [shape = 's32[1]{0}', space=sflag, size = 0x4, scoped, tag = 'scoped memory for tpu_custom_call.1']
    #allocation10 [shape = 'u8[8192]{0}', space=vmem, size = 0x2000, scoped, tag = 'output window, operand 0, single buffered']
    %14 = vsyncpa [#allocation3], 0
    %15 = vsyncpa [#allocation6], 0
    %16 = vsyncpa [#allocation9], 0
    %17 = vsyncpa [#allocation4], 0
    // Predicated region
    $region2: #{tpu_custom_call.1} parent=1 // pred_check
      _
    $region3: #{tpu_custom_call.1} parent=1 // pred_check_branch
      %19 = sbr.rel (0) target = $region5
    $region4: #{tpu_custom_call.1} parent=1 // pred_region
      %21 = vsyncadd [#allocation3], 0
      %s22 = sshll.u32 %s0, 4
      %s23 = int_to_ptr.hbm [resolvable:$true] %s22
      %s24 = sshll.u32 [#allocation2], 4
      %s25 = int_to_ptr.vmem [resolvable:$true] %s24
      %30 = dma.hbm_to_vmem [thread:$0]  %s23, 256, %s25, [#allocation3], 128, 128, 8
    $region5: #{tpu_custom_call.1} parent=1 // pred_fallthru
      _
    // Predicated region
    $region6: #{tpu_custom_call.1} parent=1 // pred_check
      _
    $region7: #{tpu_custom_call.1} parent=1 // pred_check_branch
      %32 = sbr.rel (0) target = $region9
    $region8: #{tpu_custom_call.1} parent=1 // pred_region
      _
    $region9: #{tpu_custom_call.1} parent=1 // pred_fallthru
      _
    // Predicated region
    $region10: #{tpu_custom_call.1} parent=1 // pred_check
      _
    $region11: #{tpu_custom_call.1} parent=1 // pred_check_branch
      %34 = sbr.rel (0) target = $region13
    $region12: #{tpu_custom_call.1} parent=1 // pred_region
      %36 = vsyncadd [#allocation6], 0
      %s37 = sshll.u32 %s2, 4
      %s38 = int_to_ptr.hbm [resolvable:$true] %s37
      %s39 = sshll.u32 [#allocation5], 4
      %s40 = int_to_ptr.vmem [resolvable:$true] %s39
      %45 = dma.hbm_to_vmem [thread:$0]  %s38, 32, %s40, [#allocation6], 16, 16, 1
    $region13: #{tpu_custom_call.1} parent=1 // pred_fallthru
      _
    // Predicated region
    $region14: #{tpu_custom_call.1} parent=1 // pred_check
      _
    $region15: #{tpu_custom_call.1} parent=1 // pred_check_branch
      %47 = sbr.rel (0) target = $region17
    $region16: #{tpu_custom_call.1} parent=1 // pred_region
      _
    $region17: #{tpu_custom_call.1} parent=1 // pred_fallthru
      _
    // Predicated region
    $region18: #{tpu_custom_call.1} parent=1 // pred_check
      _
    $region19: #{tpu_custom_call.1} parent=1 // pred_check_branch
      %49 = sbr.rel (0) target = $region21
    $region20: #{tpu_custom_call.1} parent=1 // pred_region
      %51 = vsyncadd [#allocation6], 0
      %s52 = sshll.u32 %s4, 4
      %s53 = int_to_ptr.hbm [resolvable:$true] %s52
      %s54 = sshll.u32 [#allocation7], 4
      %s55 = int_to_ptr.vmem [resolvable:$true] %s54
      %60 = dma.hbm_to_vmem [thread:$0]  %s53, 512, %s55, [#allocation6], 64, 64, 4
    $region21: #{tpu_custom_call.1} parent=1 // pred_fallthru
      _
    // Predicated region
    $region22: #{tpu_custom_call.1} parent=1 // pred_check
      _
    $region23: #{tpu_custom_call.1} parent=1 // pred_check_branch
      %62 = sbr.rel (0) target = $region25
    $region24: #{tpu_custom_call.1} parent=1 // pred_region
      _
    $region25: #{tpu_custom_call.1} parent=1 // pred_fallthru
      _
    // Predicated region
    $region26: #{tpu_custom_call.1} parent=1 // pred_check
      _
    $region27: #{tpu_custom_call.1} parent=1 // pred_check_branch
      %64 = sbr.rel (0) target = $region29
    $region28: #{tpu_custom_call.1} parent=1 // pred_region
      %66 = vsyncadd [#allocation9], 0
      %s67 = sshll.u32 %s6, 4
      %s68 = int_to_ptr.hbm [resolvable:$true] %s67
      %s69 = sshll.u32 [#allocation8], 4
      %s70 = int_to_ptr.vmem [resolvable:$true] %s69
      %75 = dma.hbm_to_vmem [thread:$0]  %s68, 512, %s70, [#allocation9], 64, 64, 4
    $region29: #{tpu_custom_call.1} parent=1 // pred_fallthru
      _
    // Predicated region
    $region30: #{tpu_custom_call.1} parent=1 // pred_check
      _
    $region31: #{tpu_custom_call.1} parent=1 // pred_check_branch
      %77 = sbr.rel (0) target = $region33
    $region32: #{tpu_custom_call.1} parent=1 // pred_region
      _
    $region33: #{tpu_custom_call.1} parent=1 // pred_fallthru
      _
    // Predicated region
    $region34: #{tpu_custom_call.1} parent=1 // pred_check
      _
    $region35: #{tpu_custom_call.1} parent=1 // pred_check_branch
      %79 = sbr.rel (0) target = $region37
    $region36: #{tpu_custom_call.1} parent=1 // pred_region
      _
    $region37: #{tpu_custom_call.1} parent=1 // pred_fallthru
      _
    // Predicated region
    $region38: #{tpu_custom_call.1} parent=1 // pred_check
      _
    $region39: #{tpu_custom_call.1} parent=1 // pred_check_branch
      %81 = sbr.rel (0) target = $region41
    $region40: #{tpu_custom_call.1} parent=1 // pred_region
      %83 = dma.done [#allocation3], 256
    $region41: #{tpu_custom_call.1} parent=1 // pred_fallthru
      _
    // Predicated region
    $region42: #{tpu_custom_call.1} parent=1 // pred_check
      _
    $region43: #{tpu_custom_call.1} parent=1 // pred_check_branch
      %85 = sbr.rel (0) target = $region45
    $region44: #{tpu_custom_call.1} parent=1 // pred_region
      %87 = dma.done [#allocation6], 32
    $region45: #{tpu_custom_call.1} parent=1 // pred_fallthru
      _
    // Predicated region
    $region46: #{tpu_custom_call.1} parent=1 // pred_check
      _
    $region47: #{tpu_custom_call.1} parent=1 // pred_check_branch
      %89 = sbr.rel (0) target = $region49
    $region48: #{tpu_custom_call.1} parent=1 // pred_region
      %91 = dma.done [#allocation6], 512
    $region49: #{tpu_custom_call.1} parent=1 // pred_fallthru
      _
    // Predicated region
    $region50: #{tpu_custom_call.1} parent=1 // pred_check
      _
    $region51: #{tpu_custom_call.1} parent=1 // pred_check_branch
      %93 = sbr.rel (0) target = $region53
    $region52: #{tpu_custom_call.1} parent=1 // pred_region
      %95 = dma.done [#allocation9], 512
    $region53: #{tpu_custom_call.1} parent=1 // pred_fallthru
      _
    %v97 = vld [vmem:[#allocation2] sm:$0xff]
    %v98 = vld [vmem:[#allocation2 + $0x8] sm:$0xff]
    %v99 = vld [vmem:[%s1] sm:$0xff]
    %v100 = vld [vmem:[%s1 + $0x8] sm:$0xff]
    %v101 = vld [vmem:[%s1 + $0x10] sm:$0xff]
    %v102 = vld [vmem:[%s1 + $0x18] sm:$0xff]
    %v103 = vld [vmem:[%s1 + $0x20] sm:$0xff]
    %v104 = vld [vmem:[%s1 + $0x28] sm:$0xff]
    %v105 = vld [vmem:[%s1 + $0x30] sm:$0xff]
    %v106 = vld [vmem:[%s1 + $0x38] sm:$0xff]
    %v107 = vld [vmem:[%s3] sm:$0xf]
    %v108 = vld [vmem:[%s3 + $0x4] sm:$0xf]
    %v109 = vld [vmem:[%s3 + $0x8] sm:$0xf]
    %v110 = vld [vmem:[%s3 + $0xc] sm:$0xf]
    %v111 = vld [vmem:[#allocation7] sm:$0xf]
    %v112 = vld [vmem:[#allocation7 + $0x4] sm:$0xf]
    %v113 = vld [vmem:[#allocation7 + $0x8] sm:$0xf]
    %v114 = vld [vmem:[#allocation7 + $0xc] sm:$0xf]
    %v115 = vld [vmem:[#allocation8] sm:$0xf]
    %v116 = vld [vmem:[#allocation8 + $0x4] sm:$0xf]
    %v117 = vld [vmem:[#allocation8 + $0x8] sm:$0xf]
    %v118 = vld [vmem:[#allocation8 + $0xc] sm:$0xf]
    %v119 = vld [vmem:[%s7] sm:$0xf]
    %v120 = vld [vmem:[%s7 + $0x4] sm:$0xf]
    %v121 = vld [vmem:[%s7 + $0x8] sm:$0xf]
    %v122 = vld [vmem:[%s7 + $0xc] sm:$0xf]
    %v123 = vld [vmem:[%s7 + $0x10] sm:$0xf]
    %v124 = vld [vmem:[%s7 + $0x14] sm:$0xf]
    %v125 = vld [vmem:[%s7 + $0x18] sm:$0xf]
    %v126 = vld [vmem:[%s7 + $0x1c] sm:$0xf]
    %v127 = vld [vmem:[#allocation5] sm:$0x1]
    %v128 = vmul.f32 %v97, %v97
    %v129 = vmul.f32 %v98, %v98
    %vm130 = vcmask 261120
    %v131 = vsel %vm130, %v128, 0.0
    %132 = vadd.xlane.f32.xlu0 %v131
    %v133 = vpop.xlane.xlu0 %132
    %v134 = vsel %vm130, %v129, 0.0
    %135 = vadd.xlane.f32.xlu0 %v134
    %v136 = vpop.xlane.xlu0 %135
    %v137 = vrcp.pop 32.0
    %v138 = vmul.f32 32.0, %v137
    %v139 = vsub.f32 1.0, %v138
    %v140 = vmul.f32 %v137, %v139
    %v141 = vadd.f32 %v137, %v140
    %vm142 = vweird.f32 %v137
    %v143 = vsel %vm142, %v137, %v141
    %v144 = vmul.f32 %v133, %v143
    %v145 = vmul.f32 %v136, %v143
    %v146 = vadd.f32 %v144, 1e-06
    %v147 = vadd.f32 %v145, 1e-06
    %v148 = vrsqrt.pop %v146
    %v149 = vmul.f32 %v148, %v146
    %v150 = vmul.f32 %v149, %v148
    %v151 = vmul.f32 0.5, %v150
    %v152 = vsub.f32 1.5, %v151
    %v153 = vmul.f32 %v148, %v152
    %vm154 = vweird.f32 %v146
    %vm155 = vweird.f32 %v148
    %vm156 = vmor %vm154, %vm155
    %v157 = vsel %vm156, %v148, %v153
    %v158 = vrsqrt.pop %v147
    %v159 = vmul.f32 %v158, %v147
    %v160 = vmul.f32 %v159, %v158
    %v161 = vmul.f32 0.5, %v160
    %v162 = vsub.f32 1.5, %v161
    %v163 = vmul.f32 %v158, %v162
    %vm164 = vweird.f32 %v147
    %vm165 = vweird.f32 %v158
    %vm166 = vmor %vm164, %vm165
    %v167 = vsel %vm166, %v158, %v163
    %v168 = vmul.f32 %v97, %v157
    %v169 = vmul.f32 %v98, %v167
    %v171 = vperm.slane %v127, 0
    %v173 = vmul.f32 %v168, %v171
    %v174 = vmul.f32 %v169, %v171
    %v175 = vpack.c.bf16 %v174, %v173
    %v180 = vunpack.c.l.b16 %v107
    %v181 = vunpack.c.l.b16 %v108
    %v182 = vunpack.c.l.b16 %v109
    %v183 = vunpack.c.l.b16 %v110
    %v184 = vpack.c.b16 %v181, %v180
    %v185 = vpack.c.b16 %v183, %v182
    %v189 = vsel %vm130, %v175, 0
    %191 = vmatpush.bf16.msra.mxu0 0
    %192 = vmatpush.bf16.msra.mxu0 0
    %193 = vmatpush.bf16.msra.mxu0 0
    %194 = vmatpush.bf16.msra.mxu0 0
    %195 = vmatpush.bf16.msra.mxu0 0
    %196 = vmatpush.bf16.msra.mxu0 0
    %197 = vmatpush.bf16.msra.mxu0 %v185
    %198 = vmatpush.bf16.msra.mxu0 %v184
    %199 = vmatmul.bf16.gmra.mxu0 %v189
    %v200 = vpop.f32.mrf.mxu0
    %v201 = vadd.f32 0.0, %v200
    %v202 = vpop.f32.mrf.mxu0
    %v203 = vadd.f32 0.0, %v202
    %204 = vdwg.mxu0
    %v205 = vpack.c.bf16 %v203, %v201
    %207 = vrot.lane.b32.xlu0 %v205, 96
    %v208 = vpop.permute.xlu0 %207
    %vm209 = vcmask 64512
    %v211 = vsel %vm209, %v205, 0
    %v214 = vsel %vm209, %v208, 0
    %216 = vmatpush.bf16.xpose.msra.mxu0 0
    %217 = vmatpush.bf16.xpose.msra.mxu0 0
    %218 = vmatpush.bf16.xpose.msra.mxu0 0
    %219 = vmatpush.bf16.xpose.msra.mxu0 0
    %220 = vmatpush.bf16.xpose.msra.mxu0 0
    %221 = vmatpush.bf16.xpose.msra.mxu0 0
    %222 = vmatpush.bf16.xpose.msra.mxu0 0
    %223 = vmatpush.bf16.xpose.msra.mxu0 %v214
    %224 = vmatmul.bf16.gmra.mxu0 %v211
    %v225 = vpop.f32.mrf.mxu0
    %v226 = vadd.f32 %v99, %v225
    %v227 = vpop.f32.mrf.mxu0
    %v228 = vadd.f32 %v100, %v227
    %229 = vdwg.mxu0
    %vm230 = vcmask 130048
    %v231 = vsel %vm230, %v226, -inf
    %232 = vmax.xlane.f32.xlu0 %v231
    %v233 = vpop.xlane.xlu0 %232
    %v234 = vsel %vm230, %v228, -inf
    %235 = vmax.xlane.f32.xlu0 %v234
    %v236 = vpop.xlane.xlu0 %235
    %v237 = vsub.f32 %v226, %v233
    %v238 = vsub.f32 %v228, %v236
    %v239 = vmul.f32 %v237, 1.442695
    %v240 = vpow.pop %v239
    %v241 = vmul.f32 %v238, 1.442695
    %v242 = vpow.pop %v241
    %v243 = vsel %vm230, %v240, 0.0
    %244 = vadd.xlane.f32.xlu0 %v243
    %v245 = vpop.xlane.xlu0 %244
    %v246 = vsel %vm230, %v242, 0.0
    %247 = vadd.xlane.f32.xlu0 %v246
    %v248 = vpop.xlane.xlu0 %247
    %v249 = vrcp.pop %v245
    %v250 = vrcp.pop %v248
    %v251 = vmul.f32 %v240, %v249
    %v252 = vmul.f32 %v242, %v250
    %v253 = vpack.c.bf16 %v252, %v251
    %254 = vrot.lane.b32.xlu0 %v205, 64
    %v255 = vpop.permute.xlu0 %254
    %v258 = vsel %vm230, %v253, 0
    %260 = vmatpush.bf16.msra.mxu0 0
    %261 = vmatpush.bf16.msra.mxu0 0
    %262 = vmatpush.bf16.msra.mxu0 0
    %263 = vmatpush.bf16.msra.mxu0 0
    %264 = vmatpush.bf16.msra.mxu0 0
    %265 = vmatpush.bf16.msra.mxu0 0
    %266 = vmatpush.bf16.msra.mxu0 0
    %267 = vmatpush.bf16.msra.mxu0 %v255
    %268 = vmatmul.bf16.gmra.mxu0 %v258
    %v269 = vpop.f32.mrf.mxu0
    %v270 = vadd.f32 0.0, %v269
    %v271 = vpop.f32.mrf.mxu0
    %v272 = vadd.f32 0.0, %v271
    %273 = vdwg.mxu0
    %v274 = vpack.c.bf16 %v272, %v270
    %275 = vrot.lane.b32.xlu0 %v205, 120
    %v276 = vpop.permute.xlu0 %275
    %277 = vrot.lane.b32.xlu0 %v205, 88
    %v278 = vpop.permute.xlu0 %277
    %v280 = vsel %vm209, %v276, 0
    %v283 = vsel %vm209, %v278, 0
    %285 = vmatpush.bf16.xpose.msra.mxu0 0
    %286 = vmatpush.bf16.xpose.msra.mxu0 0
    %287 = vmatpush.bf16.xpose.msra.mxu0 0
    %288 = vmatpush.bf16.xpose.msra.mxu0 0
    %289 = vmatpush.bf16.xpose.msra.mxu0 0
    %290 = vmatpush.bf16.xpose.msra.mxu0 0
    %291 = vmatpush.bf16.xpose.msra.mxu0 0
    %292 = vmatpush.bf16.xpose.msra.mxu0 %v283
    %293 = vmatmul.bf16.gmra.mxu0 %v280
    %v294 = vpop.f32.mrf.mxu0
    %v295 = vadd.f32 %v101, %v294
    %v296 = vpop.f32.mrf.mxu0
    %v297 = vadd.f32 %v102, %v296
    %298 = vdwg.mxu0
    %v299 = vsel %vm230, %v295, -inf
    %300 = vmax.xlane.f32.xlu0 %v299
    %v301 = vpop.xlane.xlu0 %300
    %v302 = vsel %vm230, %v297, -inf
    %303 = vmax.xlane.f32.xlu0 %v302
    %v304 = vpop.xlane.xlu0 %303
    %v305 = vsub.f32 %v295, %v301
    %v306 = vsub.f32 %v297, %v304
    %v307 = vmul.f32 %v305, 1.442695
    %v308 = vpow.pop %v307
    %v309 = vmul.f32 %v306, 1.442695
    %v310 = vpow.pop %v309
    %v311 = vsel %vm230, %v308, 0.0
    %312 = vadd.xlane.f32.xlu0 %v311
    %v313 = vpop.xlane.xlu0 %312
    %v314 = vsel %vm230, %v310, 0.0
    %315 = vadd.xlane.f32.xlu0 %v314
    %v316 = vpop.xlane.xlu0 %315
    %v317 = vrcp.pop %v313
    %v318 = vrcp.pop %v316
    %v319 = vmul.f32 %v308, %v317
    %v320 = vmul.f32 %v310, %v318
    %v321 = vpack.c.bf16 %v320, %v319
    %322 = vrot.lane.b32.xlu0 %v205, 56
    %v323 = vpop.permute.xlu0 %322
    %v326 = vsel %vm230, %v321, 0
    %328 = vmatpush.bf16.msra.mxu0 0
    %329 = vmatpush.bf16.msra.mxu0 0
    %330 = vmatpush.bf16.msra.mxu0 0
    %331 = vmatpush.bf16.msra.mxu0 0
    %332 = vmatpush.bf16.msra.mxu0 0
    %333 = vmatpush.bf16.msra.mxu0 0
    %334 = vmatpush.bf16.msra.mxu0 0
    %335 = vmatpush.bf16.msra.mxu0 %v323
    %336 = vmatmul.bf16.gmra.mxu0 %v326
    %v337 = vpop.f32.mrf.mxu0
    %v338 = vadd.f32 0.0, %v337
    %v339 = vpop.f32.mrf.mxu0
    %v340 = vadd.f32 0.0, %v339
    %341 = vdwg.mxu0
    %v342 = vpack.c.bf16 %v340, %v338
    %v344 = vsel %vm209, %v342, 0
    %vm346 = vcmask 1043456
    %v348 = vsel %vm346, %v112, 0
    %350 = vmatpush.bf16.msra.mxu0 0
    %351 = vmatpush.bf16.msra.mxu0 0
    %352 = vmatpush.bf16.msra.mxu0 0
    %353 = vmatpush.bf16.msra.mxu0 0
    %354 = vmatpush.bf16.msra.mxu0 0
    %355 = vmatpush.bf16.msra.mxu0 0
    %356 = vmatpush.bf16.msra.mxu0 0
    %357 = vmatpush.bf16.msra.mxu0 %v348
    %358 = vmatmul.bf16.gmra.mxu0 %v344
    %v359 = vpop.f32.mrf.mxu0
    %v360 = vadd.f32 0.0, %v359
    %v361 = vpop.f32.mrf.mxu0
    %v362 = vadd.f32 0.0, %v361
    %363 = vdwg.mxu0
    %v365 = vsel %vm209, %v274, 0
    %v368 = vsel %vm346, %v111, 0
    %370 = vmatpush.bf16.msra.mxu0 0
    %371 = vmatpush.bf16.msra.mxu0 0
    %372 = vmatpush.bf16.msra.mxu0 0
    %373 = vmatpush.bf16.msra.mxu0 0
    %374 = vmatpush.bf16.msra.mxu0 0
    %375 = vmatpush.bf16.msra.mxu0 0
    %376 = vmatpush.bf16.msra.mxu0 0
    %377 = vmatpush.bf16.msra.mxu0 %v368
    %378 = vmatmul.bf16.gmra.mxu0 %v365
    %v379 = vpop.f32.mrf.mxu0
    %v380 = vadd.f32 %v360, %v379
    %v381 = vpop.f32.mrf.mxu0
    %v382 = vadd.f32 %v362, %v381
    %383 = vdwg.mxu0
    %384 = vrot.lane.b32.xlu0 %v205, 112
    %v385 = vpop.permute.xlu0 %384
    %386 = vrot.lane.b32.xlu0 %v205, 80
    %v387 = vpop.permute.xlu0 %386
    %v389 = vsel %vm209, %v385, 0
    %v392 = vsel %vm209, %v387, 0
    %394 = vmatpush.bf16.xpose.msra.mxu0 0
    %395 = vmatpush.bf16.xpose.msra.mxu0 0
    %396 = vmatpush.bf16.xpose.msra.mxu0 0
    %397 = vmatpush.bf16.xpose.msra.mxu0 0
    %398 = vmatpush.bf16.xpose.msra.mxu0 0
    %399 = vmatpush.bf16.xpose.msra.mxu0 0
    %400 = vmatpush.bf16.xpose.msra.mxu0 0
    %401 = vmatpush.bf16.xpose.msra.mxu0 %v392
    %402 = vmatmul.bf16.gmra.mxu0 %v389
    %v403 = vpop.f32.mrf.mxu0
    %v404 = vadd.f32 %v103, %v403
    %v405 = vpop.f32.mrf.mxu0
    %v406 = vadd.f32 %v104, %v405
    %407 = vdwg.mxu0
    %v408 = vsel %vm230, %v404, -inf
    %409 = vmax.xlane.f32.xlu0 %v408
    %v410 = vpop.xlane.xlu0 %409
    %v411 = vsel %vm230, %v406, -inf
    %412 = vmax.xlane.f32.xlu0 %v411
    %v413 = vpop.xlane.xlu0 %412
    %v414 = vsub.f32 %v404, %v410
    %v415 = vsub.f32 %v406, %v413
    %v416 = vmul.f32 %v414, 1.442695
    %v417 = vpow.pop %v416
    %v418 = vmul.f32 %v415, 1.442695
    %v419 = vpow.pop %v418
    %v420 = vsel %vm230, %v417, 0.0
    %421 = vadd.xlane.f32.xlu0 %v420
    %v422 = vpop.xlane.xlu0 %421
    %v423 = vsel %vm230, %v419, 0.0
    %424 = vadd.xlane.f32.xlu0 %v423
    %v425 = vpop.xlane.xlu0 %424
    %v426 = vrcp.pop %v422
    %v427 = vrcp.pop %v425
    %v428 = vmul.f32 %v417, %v426
    %v429 = vmul.f32 %v419, %v427
    %v430 = vpack.c.bf16 %v429, %v428
    %431 = vrot.lane.b32.xlu0 %v205, 48
    %v432 = vpop.permute.xlu0 %431
    %v435 = vsel %vm230, %v430, 0
    %437 = vmatpush.bf16.msra.mxu0 0
    %438 = vmatpush.bf16.msra.mxu0 0
    %439 = vmatpush.bf16.msra.mxu0 0
    %440 = vmatpush.bf16.msra.mxu0 0
    %441 = vmatpush.bf16.msra.mxu0 0
    %442 = vmatpush.bf16.msra.mxu0 0
    %443 = vmatpush.bf16.msra.mxu0 0
    %444 = vmatpush.bf16.msra.mxu0 %v432
    %445 = vmatmul.bf16.gmra.mxu0 %v435
    %v446 = vpop.f32.mrf.mxu0
    %v447 = vadd.f32 0.0, %v446
    %v448 = vpop.f32.mrf.mxu0
    %v449 = vadd.f32 0.0, %v448
    %450 = vdwg.mxu0
    %v451 = vpack.c.bf16 %v449, %v447
    %v453 = vsel %vm209, %v451, 0
    %v456 = vsel %vm346, %v113, 0
    %458 = vmatpush.bf16.msra.mxu0 0
    %459 = vmatpush.bf16.msra.mxu0 0
    %460 = vmatpush.bf16.msra.mxu0 0
    %461 = vmatpush.bf16.msra.mxu0 0
    %462 = vmatpush.bf16.msra.mxu0 0
    %463 = vmatpush.bf16.msra.mxu0 0
    %464 = vmatpush.bf16.msra.mxu0 0
    %465 = vmatpush.bf16.msra.mxu0 %v456
    %466 = vmatmul.bf16.gmra.mxu0 %v453
    %v467 = vpop.f32.mrf.mxu0
    %v468 = vadd.f32 0.0, %v467
    %v469 = vpop.f32.mrf.mxu0
    %v470 = vadd.f32 0.0, %v469
    %471 = vdwg.mxu0
    %v472 = vadd.f32 %v380, %v468
    %v473 = vadd.f32 %v382, %v470
    %474 = vrot.lane.b32.xlu0 %v205, 104
    %v475 = vpop.permute.xlu0 %474
    %476 = vrot.lane.b32.xlu0 %v205, 72
    %v477 = vpop.permute.xlu0 %476
    %v479 = vsel %vm209, %v475, 0
    %v482 = vsel %vm209, %v477, 0
    %484 = vmatpush.bf16.xpose.msra.mxu0 0
    %485 = vmatpush.bf16.xpose.msra.mxu0 0
    %486 = vmatpush.bf16.xpose.msra.mxu0 0
    %487 = vmatpush.bf16.xpose.msra.mxu0 0
    %488 = vmatpush.bf16.xpose.msra.mxu0 0
    %489 = vmatpush.bf16.xpose.msra.mxu0 0
    %490 = vmatpush.bf16.xpose.msra.mxu0 0
    %491 = vmatpush.bf16.xpose.msra.mxu0 %v482
    %492 = vmatmul.bf16.gmra.mxu0 %v479
    %v493 = vpop.f32.mrf.mxu0
    %v494 = vadd.f32 %v105, %v493
    %v495 = vpop.f32.mrf.mxu0
    %v496 = vadd.f32 %v106, %v495
    %497 = vdwg.mxu0
    %v498 = vsel %vm230, %v494, -inf
    %499 = vmax.xlane.f32.xlu0 %v498
    %v500 = vpop.xlane.xlu0 %499
    %v501 = vsel %vm230, %v496, -inf
    %502 = vmax.xlane.f32.xlu0 %v501
    %v503 = vpop.xlane.xlu0 %502
    %v504 = vsub.f32 %v494, %v500
    %v505 = vsub.f32 %v496, %v503
    %v506 = vmul.f32 %v504, 1.442695
    %v507 = vpow.pop %v506
    %v508 = vmul.f32 %v505, 1.442695
    %v509 = vpow.pop %v508
    %v510 = vsel %vm230, %v507, 0.0
    %511 = vadd.xlane.f32.xlu0 %v510
    %v512 = vpop.xlane.xlu0 %511
    %v513 = vsel %vm230, %v509, 0.0
    %514 = vadd.xlane.f32.xlu0 %v513
    %v515 = vpop.xlane.xlu0 %514
    %v516 = vrcp.pop %v512
    %v517 = vrcp.pop %v515
    %v518 = vmul.f32 %v507, %v516
    %v519 = vmul.f32 %v509, %v517
    %v520 = vpack.c.bf16 %v519, %v518
    %521 = vrot.lane.b32.xlu0 %v205, 40
    %v522 = vpop.permute.xlu0 %521
    %v525 = vsel %vm230, %v520, 0
    %527 = vmatpush.bf16.msra.mxu0 0
    %528 = vmatpush.bf16.msra.mxu0 0
    %529 = vmatpush.bf16.msra.mxu0 0
    %530 = vmatpush.bf16.msra.mxu0 0
    %531 = vmatpush.bf16.msra.mxu0 0
    %532 = vmatpush.bf16.msra.mxu0 0
    %533 = vmatpush.bf16.msra.mxu0 0
    %534 = vmatpush.bf16.msra.mxu0 %v522
    %535 = vmatmul.bf16.gmra.mxu0 %v525
    %v536 = vpop.f32.mrf.mxu0
    %v537 = vadd.f32 0.0, %v536
    %v538 = vpop.f32.mrf.mxu0
    %v539 = vadd.f32 0.0, %v538
    %540 = vdwg.mxu0
    %v541 = vpack.c.bf16 %v539, %v537
    %v543 = vsel %vm209, %v541, 0
    %v546 = vsel %vm346, %v114, 0
    %548 = vmatpush.bf16.msra.mxu0 0
    %549 = vmatpush.bf16.msra.mxu0 0
    %550 = vmatpush.bf16.msra.mxu0 0
    %551 = vmatpush.bf16.msra.mxu0 0
    %552 = vmatpush.bf16.msra.mxu0 0
    %553 = vmatpush.bf16.msra.mxu0 0
    %554 = vmatpush.bf16.msra.mxu0 0
    %555 = vmatpush.bf16.msra.mxu0 %v546
    %556 = vmatmul.bf16.gmra.mxu0 %v543
    %v557 = vpop.f32.mrf.mxu0
    %v558 = vadd.f32 0.0, %v557
    %v559 = vpop.f32.mrf.mxu0
    %v560 = vadd.f32 0.0, %v559
    %561 = vdwg.mxu0
    %v562 = vadd.f32 %v472, %v558
    %v563 = vadd.f32 %v473, %v560
    %v564 = vadd.f32 %v97, %v562
    %v565 = vadd.f32 %v98, %v563
    %v566 = vld [vmem:[%s5] sm:$0x1]
    %v567 = vmul.f32 %v564, %v564
    %v568 = vmul.f32 %v565, %v565
    %v569 = vsel %vm130, %v567, 0.0
    %570 = vadd.xlane.f32.xlu0 %v569
    %v571 = vpop.xlane.xlu0 %570
    %v572 = vsel %vm130, %v568, 0.0
    %573 = vadd.xlane.f32.xlu0 %v572
    %v574 = vpop.xlane.xlu0 %573
    %v575 = vmul.f32 %v571, %v143
    %v576 = vmul.f32 %v574, %v143
    %v577 = vadd.f32 %v575, 1e-06
    %v578 = vadd.f32 %v576, 1e-06
    %v579 = vrsqrt.pop %v577
    %v580 = vmul.f32 %v579, %v577
    %v581 = vmul.f32 %v580, %v579
    %v582 = vmul.f32 0.5, %v581
    %v583 = vsub.f32 1.5, %v582
    %v584 = vmul.f32 %v579, %v583
    %vm585 = vweird.f32 %v577
    %vm586 = vweird.f32 %v579
    %vm587 = vmor %vm585, %vm586
    %v588 = vsel %vm587, %v579, %v584
    %v589 = vrsqrt.pop %v578
    %v590 = vmul.f32 %v589, %v578
    %v591 = vmul.f32 %v590, %v589
    %v592 = vmul.f32 0.5, %v591
    %v593 = vsub.f32 1.5, %v592
    %v594 = vmul.f32 %v589, %v593
    %vm595 = vweird.f32 %v578
    %vm596 = vweird.f32 %v589
    %vm597 = vmor %vm595, %vm596
    %v598 = vsel %vm597, %v589, %v594
    %v599 = vmul.f32 %v564, %v588
    %v600 = vmul.f32 %v565, %v598
    %v602 = vperm.slane %v566, 0
    %v604 = vmul.f32 %v599, %v602
    %v605 = vmul.f32 %v600, %v602
    %v606 = vpack.c.bf16 %v605, %v604
    %v611 = vunpack.c.l.b16 %v115
    %v612 = vunpack.c.l.b16 %v116
    %v613 = vunpack.c.l.b16 %v117
    %v614 = vunpack.c.l.b16 %v118
    %v615 = vpack.c.b16 %v612, %v611
    %v616 = vpack.c.b16 %v614, %v613
    %v620 = vsel %vm130, %v606, 0
    %622 = vmatpush.bf16.msra.mxu0 0
    %623 = vmatpush.bf16.msra.mxu0 0
    %624 = vmatpush.bf16.msra.mxu0 0
    %625 = vmatpush.bf16.msra.mxu0 0
    %626 = vmatpush.bf16.msra.mxu0 0
    %627 = vmatpush.bf16.msra.mxu0 0
    %628 = vmatpush.bf16.msra.mxu0 %v616
    %629 = vmatpush.bf16.msra.mxu0 %v615
    %630 = vmatmul.bf16.gmra.mxu0 %v620
    %v631 = vpop.f32.mrf.mxu0
    %v632 = vadd.f32 0.0, %v631
    %v633 = vpop.f32.mrf.mxu0
    %v634 = vadd.f32 0.0, %v633
    %635 = vdwg.mxu0
    %v636 = vmul.f32 %v632, 0.5
    %v637 = vmul.f32 %v634, 0.5
    %v638 = vmul.f32 %v632, 0.044715
    %v639 = vmul.f32 %v634, 0.044715
    %v640 = vmul.f32 %v638, %v632
    %v641 = vmul.f32 %v639, %v634
    %v642 = vmul.f32 %v640, %v632
    %v643 = vmul.f32 %v641, %v634
    %v644 = vadd.f32 %v632, %v642
    %v645 = vadd.f32 %v634, %v643
    %v646 = vmul.f32 %v644, 0.7978846
    %v647 = vmul.f32 %v645, 0.7978846
    %v648 = vtanh.pop %v646
    %v649 = vtanh.pop %v647
    %v650 = vadd.f32 %v648, 1.0
    %v651 = vadd.f32 %v649, 1.0
    %v652 = vmul.f32 %v636, %v650
    %v653 = vmul.f32 %v637, %v651
    %656 = vrot.lane.b32.xlu0 %v632, 64
    %v657 = vpop.permute.xlu0 %656
    %658 = vrot.lane.b32.xlu0 %v634, 64
    %v659 = vpop.permute.xlu0 %658
    %v662 = vmul.f32 %v652, %v657
    %v663 = vmul.f32 %v653, %v659
    %v664 = vpack.c.bf16 %v663, %v662
    %v673 = vunpack.c.l.b16 %v119
    %v674 = vunpack.c.l.b16 %v120
    %v675 = vunpack.c.l.b16 %v121
    %v676 = vunpack.c.l.b16 %v122
    %v677 = vunpack.c.l.b16 %v123
    %v678 = vunpack.c.l.b16 %v124
    %v679 = vunpack.c.l.b16 %v125
    %v680 = vunpack.c.l.b16 %v126
    %v681 = vpack.c.b16 %v674, %v673
    %v682 = vpack.c.b16 %v676, %v675
    %v683 = vpack.c.b16 %v678, %v677
    %v684 = vpack.c.b16 %v680, %v679
    %vm689 = vcmask 523264
    %v691 = vsel %vm689, %v664, 0
    %693 = vmatpush.bf16.msra.mxu0 0
    %694 = vmatpush.bf16.msra.mxu0 0
    %695 = vmatpush.bf16.msra.mxu0 0
    %696 = vmatpush.bf16.msra.mxu0 0
    %697 = vmatpush.bf16.msra.mxu0 %v684
    %698 = vmatpush.bf16.msra.mxu0 %v683
    %699 = vmatpush.bf16.msra.mxu0 %v682
    %700 = vmatpush.bf16.msra.mxu0 %v681
    %701 = vmatmul.bf16.gmra.mxu0 %v691
    %v702 = vpop.f32.mrf.mxu0
    %v703 = vadd.f32 0.0, %v702
    %v704 = vpop.f32.mrf.mxu0
    %v705 = vadd.f32 0.0, %v704
    %706 = vdwg.mxu0
    %v707 = vadd.f32 %v564, %v703
    %v708 = vadd.f32 %v565, %v705
    %s709 = scalar_lea.vmem %s3, 16
    %v710 = vld [vmem:[%s709] sm:$0xf]
    %v711 = vld [vmem:[%s709 + $0x4] sm:$0xf]
    %v712 = vld [vmem:[%s709 + $0x8] sm:$0xf]
    %v713 = vld [vmem:[%s709 + $0xc] sm:$0xf]
    %s714 = scalar_lea.vmem [#allocation7], 16
    %v715 = vld [vmem:[%s714] sm:$0xf]
    %v716 = vld [vmem:[%s714 + $0x4] sm:$0xf]
    %v717 = vld [vmem:[%s714 + $0x8] sm:$0xf]
    %v718 = vld [vmem:[%s714 + $0xc] sm:$0xf]
    %s719 = scalar_lea.vmem [#allocation8], 16
    %v720 = vld [vmem:[%s719] sm:$0xf]
    %v721 = vld [vmem:[%s719 + $0x4] sm:$0xf]
    %v722 = vld [vmem:[%s719 + $0x8] sm:$0xf]
    %v723 = vld [vmem:[%s719 + $0xc] sm:$0xf]
    %s724 = scalar_lea.vmem %s7, 32
    %v725 = vld [vmem:[%s724] sm:$0xf]
    %v726 = vld [vmem:[%s724 + $0x4] sm:$0xf]
    %v727 = vld [vmem:[%s724 + $0x8] sm:$0xf]
    %v728 = vld [vmem:[%s724 + $0xc] sm:$0xf]
    %v729 = vld [vmem:[%s724 + $0x10] sm:$0xf]
    %v730 = vld [vmem:[%s724 + $0x14] sm:$0xf]
    %v731 = vld [vmem:[%s724 + $0x18] sm:$0xf]
    %v732 = vld [vmem:[%s724 + $0x1c] sm:$0xf]
    %s733 = scalar_lea.vmem [#allocation5], 1
    %v734 = vld [vmem:[%s733] sm:$0x1]
    %v735 = vmul.f32 %v707, %v707
    %v736 = vmul.f32 %v708, %v708
    %v737 = vsel %vm130, %v735, 0.0
    %738 = vadd.xlane.f32.xlu0 %v737
    %v739 = vpop.xlane.xlu0 %738
    %v740 = vsel %vm130, %v736, 0.0
    %741 = vadd.xlane.f32.xlu0 %v740
    %v742 = vpop.xlane.xlu0 %741
    %v743 = vmul.f32 %v739, %v143
    %v744 = vmul.f32 %v742, %v143
    %v745 = vadd.f32 %v743, 1e-06
    %v746 = vadd.f32 %v744, 1e-06
    %v747 = vrsqrt.pop %v745
    %v748 = vmul.f32 %v747, %v745
    %v749 = vmul.f32 %v748, %v747
    %v750 = vmul.f32 0.5, %v749
    %v751 = vsub.f32 1.5, %v750
    %v752 = vmul.f32 %v747, %v751
    %vm753 = vweird.f32 %v745
    %vm754 = vweird.f32 %v747
    %vm755 = vmor %vm753, %vm754
    %v756 = vsel %vm755, %v747, %v752
    %v757 = vrsqrt.pop %v746
    %v758 = vmul.f32 %v757, %v746
    %v759 = vmul.f32 %v758, %v757
    %v760 = vmul.f32 0.5, %v759
    %v761 = vsub.f32 1.5, %v760
    %v762 = vmul.f32 %v757, %v761
    %vm763 = vweird.f32 %v746
    %vm764 = vweird.f32 %v757
    %vm765 = vmor %vm763, %vm764
    %v766 = vsel %vm765, %v757, %v762
    %v767 = vmul.f32 %v707, %v756
    %v768 = vmul.f32 %v708, %v766
    %v770 = vperm.slane %v734, 0
    %v772 = vmul.f32 %v767, %v770
    %v773 = vmul.f32 %v768, %v770
    %v774 = vpack.c.bf16 %v773, %v772
    %v779 = vunpack.c.l.b16 %v710
    %v780 = vunpack.c.l.b16 %v711
    %v781 = vunpack.c.l.b16 %v712
    %v782 = vunpack.c.l.b16 %v713
    %v783 = vpack.c.b16 %v780, %v779
    %v784 = vpack.c.b16 %v782, %v781
    %v788 = vsel %vm130, %v774, 0
    %790 = vmatpush.bf16.msra.mxu0 0
    %791 = vmatpush.bf16.msra.mxu0 0
    %792 = vmatpush.bf16.msra.mxu0 0
    %793 = vmatpush.bf16.msra.mxu0 0
    %794 = vmatpush.bf16.msra.mxu0 0
    %795 = vmatpush.bf16.msra.mxu0 0
    %796 = vmatpush.bf16.msra.mxu0 %v784
    %797 = vmatpush.bf16.msra.mxu0 %v783
    %798 = vmatmul.bf16.gmra.mxu0 %v788
    %v799 = vpop.f32.mrf.mxu0
    %v800 = vadd.f32 0.0, %v799
    %v801 = vpop.f32.mrf.mxu0
    %v802 = vadd.f32 0.0, %v801
    %803 = vdwg.mxu0
    %v804 = vpack.c.bf16 %v802, %v800
    %806 = vrot.lane.b32.xlu0 %v804, 96
    %v807 = vpop.permute.xlu0 %806
    %v809 = vsel %vm209, %v804, 0
    %v812 = vsel %vm209, %v807, 0
    %814 = vmatpush.bf16.xpose.msra.mxu0 0
    %815 = vmatpush.bf16.xpose.msra.mxu0 0
    %816 = vmatpush.bf16.xpose.msra.mxu0 0
    %817 = vmatpush.bf16.xpose.msra.mxu0 0
    %818 = vmatpush.bf16.xpose.msra.mxu0 0
    %819 = vmatpush.bf16.xpose.msra.mxu0 0
    %820 = vmatpush.bf16.xpose.msra.mxu0 0
    %821 = vmatpush.bf16.xpose.msra.mxu0 %v812
    %822 = vmatmul.bf16.gmra.mxu0 %v809
    %v823 = vpop.f32.mrf.mxu0
    %v824 = vadd.f32 %v99, %v823
    %v825 = vpop.f32.mrf.mxu0
    %v826 = vadd.f32 %v100, %v825
    %827 = vdwg.mxu0
    %v828 = vsel %vm230, %v824, -inf
    %829 = vmax.xlane.f32.xlu0 %v828
    %v830 = vpop.xlane.xlu0 %829
    %v831 = vsel %vm230, %v826, -inf
    %832 = vmax.xlane.f32.xlu0 %v831
    %v833 = vpop.xlane.xlu0 %832
    %v834 = vsub.f32 %v824, %v830
    %v835 = vsub.f32 %v826, %v833
    %v836 = vmul.f32 %v834, 1.442695
    %v837 = vpow.pop %v836
    %v838 = vmul.f32 %v835, 1.442695
    %v839 = vpow.pop %v838
    %v840 = vsel %vm230, %v837, 0.0
    %841 = vadd.xlane.f32.xlu0 %v840
    %v842 = vpop.xlane.xlu0 %841
    %v843 = vsel %vm230, %v839, 0.0
    %844 = vadd.xlane.f32.xlu0 %v843
    %v845 = vpop.xlane.xlu0 %844
    %v846 = vrcp.pop %v842
    %v847 = vrcp.pop %v845
    %v848 = vmul.f32 %v837, %v846
    %v849 = vmul.f32 %v839, %v847
    %v850 = vpack.c.bf16 %v849, %v848
    %851 = vrot.lane.b32.xlu0 %v804, 64
    %v852 = vpop.permute.xlu0 %851
    %v855 = vsel %vm230, %v850, 0
    %857 = vmatpush.bf16.msra.mxu0 0
    %858 = vmatpush.bf16.msra.mxu0 0
    %859 = vmatpush.bf16.msra.mxu0 0
    %860 = vmatpush.bf16.msra.mxu0 0
    %861 = vmatpush.bf16.msra.mxu0 0
    %862 = vmatpush.bf16.msra.mxu0 0
    %863 = vmatpush.bf16.msra.mxu0 0
    %864 = vmatpush.bf16.msra.mxu0 %v852
    %865 = vmatmul.bf16.gmra.mxu0 %v855
    %v866 = vpop.f32.mrf.mxu0
    %v867 = vadd.f32 0.0, %v866
    %v868 = vpop.f32.mrf.mxu0
    %v869 = vadd.f32 0.0, %v868
    %870 = vdwg.mxu0
    %v871 = vpack.c.bf16 %v869, %v867
    %872 = vrot.lane.b32.xlu0 %v804, 120
    %v873 = vpop.permute.xlu0 %872
    %874 = vrot.lane.b32.xlu0 %v804, 88
    %v875 = vpop.permute.xlu0 %874
    %v877 = vsel %vm209, %v873, 0
    %v880 = vsel %vm209, %v875, 0
    %882 = vmatpush.bf16.xpose.msra.mxu0 0
    %883 = vmatpush.bf16.xpose.msra.mxu0 0
    %884 = vmatpush.bf16.xpose.msra.mxu0 0
    %885 = vmatpush.bf16.xpose.msra.mxu0 0
    %886 = vmatpush.bf16.xpose.msra.mxu0 0
    %887 = vmatpush.bf16.xpose.msra.mxu0 0
    %888 = vmatpush.bf16.xpose.msra.mxu0 0
    %889 = vmatpush.bf16.xpose.msra.mxu0 %v880
    %890 = vmatmul.bf16.gmra.mxu0 %v877
    %v891 = vpop.f32.mrf.mxu0
    %v892 = vadd.f32 %v101, %v891
    %v893 = vpop.f32.mrf.mxu0
    %v894 = vadd.f32 %v102, %v893
    %895 = vdwg.mxu0
    %v896 = vsel %vm230, %v892, -inf
    %897 = vmax.xlane.f32.xlu0 %v896
    %v898 = vpop.xlane.xlu0 %897
    %v899 = vsel %vm230, %v894, -inf
    %900 = vmax.xlane.f32.xlu0 %v899
    %v901 = vpop.xlane.xlu0 %900
    %v902 = vsub.f32 %v892, %v898
    %v903 = vsub.f32 %v894, %v901
    %v904 = vmul.f32 %v902, 1.442695
    %v905 = vpow.pop %v904
    %v906 = vmul.f32 %v903, 1.442695
    %v907 = vpow.pop %v906
    %v908 = vsel %vm230, %v905, 0.0
    %909 = vadd.xlane.f32.xlu0 %v908
    %v910 = vpop.xlane.xlu0 %909
    %v911 = vsel %vm230, %v907, 0.0
    %912 = vadd.xlane.f32.xlu0 %v911
    %v913 = vpop.xlane.xlu0 %912
    %v914 = vrcp.pop %v910
    %v915 = vrcp.pop %v913
    %v916 = vmul.f32 %v905, %v914
    %v917 = vmul.f32 %v907, %v915
    %v918 = vpack.c.bf16 %v917, %v916
    %919 = vrot.lane.b32.xlu0 %v804, 56
    %v920 = vpop.permute.xlu0 %919
    %v923 = vsel %vm230, %v918, 0
    %925 = vmatpush.bf16.msra.mxu0 0
    %926 = vmatpush.bf16.msra.mxu0 0
    %927 = vmatpush.bf16.msra.mxu0 0
    %928 = vmatpush.bf16.msra.mxu0 0
    %929 = vmatpush.bf16.msra.mxu0 0
    %930 = vmatpush.bf16.msra.mxu0 0
    %931 = vmatpush.bf16.msra.mxu0 0
    %932 = vmatpush.bf16.msra.mxu0 %v920
    %933 = vmatmul.bf16.gmra.mxu0 %v923
    %v934 = vpop.f32.mrf.mxu0
    %v935 = vadd.f32 0.0, %v934
    %v936 = vpop.f32.mrf.mxu0
    %v937 = vadd.f32 0.0, %v936
    %938 = vdwg.mxu0
    %v939 = vpack.c.bf16 %v937, %v935
    %v941 = vsel %vm209, %v939, 0
    %v944 = vsel %vm346, %v716, 0
    %946 = vmatpush.bf16.msra.mxu0 0
    %947 = vmatpush.bf16.msra.mxu0 0
    %948 = vmatpush.bf16.msra.mxu0 0
    %949 = vmatpush.bf16.msra.mxu0 0
    %950 = vmatpush.bf16.msra.mxu0 0
    %951 = vmatpush.bf16.msra.mxu0 0
    %952 = vmatpush.bf16.msra.mxu0 0
    %953 = vmatpush.bf16.msra.mxu0 %v944
    %954 = vmatmul.bf16.gmra.mxu0 %v941
    %v955 = vpop.f32.mrf.mxu0
    %v956 = vadd.f32 0.0, %v955
    %v957 = vpop.f32.mrf.mxu0
    %v958 = vadd.f32 0.0, %v957
    %959 = vdwg.mxu0
    %v961 = vsel %vm209, %v871, 0
    %v964 = vsel %vm346, %v715, 0
    %966 = vmatpush.bf16.msra.mxu0 0
    %967 = vmatpush.bf16.msra.mxu0 0
    %968 = vmatpush.bf16.msra.mxu0 0
    %969 = vmatpush.bf16.msra.mxu0 0
    %970 = vmatpush.bf16.msra.mxu0 0
    %971 = vmatpush.bf16.msra.mxu0 0
    %972 = vmatpush.bf16.msra.mxu0 0
    %973 = vmatpush.bf16.msra.mxu0 %v964
    %974 = vmatmul.bf16.gmra.mxu0 %v961
    %v975 = vpop.f32.mrf.mxu0
    %v976 = vadd.f32 %v956, %v975
    %v977 = vpop.f32.mrf.mxu0
    %v978 = vadd.f32 %v958, %v977
    %979 = vdwg.mxu0
    %980 = vrot.lane.b32.xlu0 %v804, 112
    %v981 = vpop.permute.xlu0 %980
    %982 = vrot.lane.b32.xlu0 %v804, 80
    %v983 = vpop.permute.xlu0 %982
    %v985 = vsel %vm209, %v981, 0
    %v988 = vsel %vm209, %v983, 0
    %990 = vmatpush.bf16.xpose.msra.mxu0 0
    %991 = vmatpush.bf16.xpose.msra.mxu0 0
    %992 = vmatpush.bf16.xpose.msra.mxu0 0
    %993 = vmatpush.bf16.xpose.msra.mxu0 0
    %994 = vmatpush.bf16.xpose.msra.mxu0 0
    %995 = vmatpush.bf16.xpose.msra.mxu0 0
    %996 = vmatpush.bf16.xpose.msra.mxu0 0
    %997 = vmatpush.bf16.xpose.msra.mxu0 %v988
    %998 = vmatmul.bf16.gmra.mxu0 %v985
    %v999 = vpop.f32.mrf.mxu0
    %v1000 = vadd.f32 %v103, %v999
    %v1001 = vpop.f32.mrf.mxu0
    %v1002 = vadd.f32 %v104, %v1001
    %1003 = vdwg.mxu0
    %v1004 = vsel %vm230, %v1000, -inf
    %1005 = vmax.xlane.f32.xlu0 %v1004
    %v1006 = vpop.xlane.xlu0 %1005
    %v1007 = vsel %vm230, %v1002, -inf
    %1008 = vmax.xlane.f32.xlu0 %v1007
    %v1009 = vpop.xlane.xlu0 %1008
    %v1010 = vsub.f32 %v1000, %v1006
    %v1011 = vsub.f32 %v1002, %v1009
    %v1012 = vmul.f32 %v1010, 1.442695
    %v1013 = vpow.pop %v1012
    %v1014 = vmul.f32 %v1011, 1.442695
    %v1015 = vpow.pop %v1014
    %v1016 = vsel %vm230, %v1013, 0.0
    %1017 = vadd.xlane.f32.xlu0 %v1016
    %v1018 = vpop.xlane.xlu0 %1017
    %v1019 = vsel %vm230, %v1015, 0.0
    %1020 = vadd.xlane.f32.xlu0 %v1019
    %v1021 = vpop.xlane.xlu0 %1020
    %v1022 = vrcp.pop %v1018
    %v1023 = vrcp.pop %v1021
    %v1024 = vmul.f32 %v1013, %v1022
    %v1025 = vmul.f32 %v1015, %v1023
    %v1026 = vpack.c.bf16 %v1025, %v1024
    %1027 = vrot.lane.b32.xlu0 %v804, 48
    %v1028 = vpop.permute.xlu0 %1027
    %v1031 = vsel %vm230, %v1026, 0
    %1033 = vmatpush.bf16.msra.mxu0 0
    %1034 = vmatpush.bf16.msra.mxu0 0
    %1035 = vmatpush.bf16.msra.mxu0 0
    %1036 = vmatpush.bf16.msra.mxu0 0
    %1037 = vmatpush.bf16.msra.mxu0 0
    %1038 = vmatpush.bf16.msra.mxu0 0
    %1039 = vmatpush.bf16.msra.mxu0 0
    %1040 = vmatpush.bf16.msra.mxu0 %v1028
    %1041 = vmatmul.bf16.gmra.mxu0 %v1031
    %v1042 = vpop.f32.mrf.mxu0
    %v1043 = vadd.f32 0.0, %v1042
    %v1044 = vpop.f32.mrf.mxu0
    %v1045 = vadd.f32 0.0, %v1044
    %1046 = vdwg.mxu0
    %v1047 = vpack.c.bf16 %v1045, %v1043
    %v1049 = vsel %vm209, %v1047, 0
    %v1052 = vsel %vm346, %v717, 0
    %1054 = vmatpush.bf16.msra.mxu0 0
    %1055 = vmatpush.bf16.msra.mxu0 0
    %1056 = vmatpush.bf16.msra.mxu0 0
    %1057 = vmatpush.bf16.msra.mxu0 0
    %1058 = vmatpush.bf16.msra.mxu0 0
    %1059 = vmatpush.bf16.msra.mxu0 0
    %1060 = vmatpush.bf16.msra.mxu0 0
    %1061 = vmatpush.bf16.msra.mxu0 %v1052
    %1062 = vmatmul.bf16.gmra.mxu0 %v1049
    %v1063 = vpop.f32.mrf.mxu0
    %v1064 = vadd.f32 0.0, %v1063
    %v1065 = vpop.f32.mrf.mxu0
    %v1066 = vadd.f32 0.0, %v1065
    %1067 = vdwg.mxu0
    %v1068 = vadd.f32 %v976, %v1064
    %v1069 = vadd.f32 %v978, %v1066
    %1070 = vrot.lane.b32.xlu0 %v804, 104
    %v1071 = vpop.permute.xlu0 %1070
    %1072 = vrot.lane.b32.xlu0 %v804, 72
    %v1073 = vpop.permute.xlu0 %1072
    %v1075 = vsel %vm209, %v1071, 0
    %v1078 = vsel %vm209, %v1073, 0
    %1080 = vmatpush.bf16.xpose.msra.mxu0 0
    %1081 = vmatpush.bf16.xpose.msra.mxu0 0
    %1082 = vmatpush.bf16.xpose.msra.mxu0 0
    %1083 = vmatpush.bf16.xpose.msra.mxu0 0
    %1084 = vmatpush.bf16.xpose.msra.mxu0 0
    %1085 = vmatpush.bf16.xpose.msra.mxu0 0
    %1086 = vmatpush.bf16.xpose.msra.mxu0 0
    %1087 = vmatpush.bf16.xpose.msra.mxu0 %v1078
    %1088 = vmatmul.bf16.gmra.mxu0 %v1075
    %v1089 = vpop.f32.mrf.mxu0
    %v1090 = vadd.f32 %v105, %v1089
    %v1091 = vpop.f32.mrf.mxu0
    %v1092 = vadd.f32 %v106, %v1091
    %1093 = vdwg.mxu0
    %v1094 = vsel %vm230, %v1090, -inf
    %1095 = vmax.xlane.f32.xlu0 %v1094
    %v1096 = vpop.xlane.xlu0 %1095
    %v1097 = vsel %vm230, %v1092, -inf
    %1098 = vmax.xlane.f32.xlu0 %v1097
    %v1099 = vpop.xlane.xlu0 %1098
    %v1100 = vsub.f32 %v1090, %v1096
    %v1101 = vsub.f32 %v1092, %v1099
    %v1102 = vmul.f32 %v1100, 1.442695
    %v1103 = vpow.pop %v1102
    %v1104 = vmul.f32 %v1101, 1.442695
    %v1105 = vpow.pop %v1104
    %v1106 = vsel %vm230, %v1103, 0.0
    %1107 = vadd.xlane.f32.xlu0 %v1106
    %v1108 = vpop.xlane.xlu0 %1107
    %v1109 = vsel %vm230, %v1105, 0.0
    %1110 = vadd.xlane.f32.xlu0 %v1109
    %v1111 = vpop.xlane.xlu0 %1110
    %v1112 = vrcp.pop %v1108
    %v1113 = vrcp.pop %v1111
    %v1114 = vmul.f32 %v1103, %v1112
    %v1115 = vmul.f32 %v1105, %v1113
    %v1116 = vpack.c.bf16 %v1115, %v1114
    %1117 = vrot.lane.b32.xlu0 %v804, 40
    %v1118 = vpop.permute.xlu0 %1117
    %v1121 = vsel %vm230, %v1116, 0
    %1123 = vmatpush.bf16.msra.mxu0 0
    %1124 = vmatpush.bf16.msra.mxu0 0
    %1125 = vmatpush.bf16.msra.mxu0 0
    %1126 = vmatpush.bf16.msra.mxu0 0
    %1127 = vmatpush.bf16.msra.mxu0 0
    %1128 = vmatpush.bf16.msra.mxu0 0
    %1129 = vmatpush.bf16.msra.mxu0 0
    %1130 = vmatpush.bf16.msra.mxu0 %v1118
    %1131 = vmatmul.bf16.gmra.mxu0 %v1121
    %v1132 = vpop.f32.mrf.mxu0
    %v1133 = vadd.f32 0.0, %v1132
    %v1134 = vpop.f32.mrf.mxu0
    %v1135 = vadd.f32 0.0, %v1134
    %1136 = vdwg.mxu0
    %v1137 = vpack.c.bf16 %v1135, %v1133
    %v1139 = vsel %vm209, %v1137, 0
    %v1142 = vsel %vm346, %v718, 0
    %1144 = vmatpush.bf16.msra.mxu0 0
    %1145 = vmatpush.bf16.msra.mxu0 0
    %1146 = vmatpush.bf16.msra.mxu0 0
    %1147 = vmatpush.bf16.msra.mxu0 0
    %1148 = vmatpush.bf16.msra.mxu0 0
    %1149 = vmatpush.bf16.msra.mxu0 0
    %1150 = vmatpush.bf16.msra.mxu0 0
    %1151 = vmatpush.bf16.msra.mxu0 %v1142
    %1152 = vmatmul.bf16.gmra.mxu0 %v1139
    %v1153 = vpop.f32.mrf.mxu0
    %v1154 = vadd.f32 0.0, %v1153
    %v1155 = vpop.f32.mrf.mxu0
    %v1156 = vadd.f32 0.0, %v1155
    %1157 = vdwg.mxu0
    %v1158 = vadd.f32 %v1068, %v1154
    %v1159 = vadd.f32 %v1069, %v1156
    %v1160 = vadd.f32 %v707, %v1158
    %v1161 = vadd.f32 %v708, %v1159
    %s1162 = scalar_lea.vmem %s5, 1
    %v1163 = vld [vmem:[%s1162] sm:$0x1]
    %v1164 = vmul.f32 %v1160, %v1160
    %v1165 = vmul.f32 %v1161, %v1161
    %v1166 = vsel %vm130, %v1164, 0.0
    %1167 = vadd.xlane.f32.xlu0 %v1166
    %v1168 = vpop.xlane.xlu0 %1167
    %v1169 = vsel %vm130, %v1165, 0.0
    %1170 = vadd.xlane.f32.xlu0 %v1169
    %v1171 = vpop.xlane.xlu0 %1170
    %v1172 = vmul.f32 %v1168, %v143
    %v1173 = vmul.f32 %v1171, %v143
    %v1174 = vadd.f32 %v1172, 1e-06
    %v1175 = vadd.f32 %v1173, 1e-06
    %v1176 = vrsqrt.pop %v1174
    %v1177 = vmul.f32 %v1176, %v1174
    %v1178 = vmul.f32 %v1177, %v1176
    %v1179 = vmul.f32 0.5, %v1178
    %v1180 = vsub.f32 1.5, %v1179
    %v1181 = vmul.f32 %v1176, %v1180
    %vm1182 = vweird.f32 %v1174
    %vm1183 = vweird.f32 %v1176
    %vm1184 = vmor %vm1182, %vm1183
    %v1185 = vsel %vm1184, %v1176, %v1181
    %v1186 = vrsqrt.pop %v1175
    %v1187 = vmul.f32 %v1186, %v1175
    %v1188 = vmul.f32 %v1187, %v1186
    %v1189 = vmul.f32 0.5, %v1188
    %v1190 = vsub.f32 1.5, %v1189
    %v1191 = vmul.f32 %v1186, %v1190
    %vm1192 = vweird.f32 %v1175
    %vm1193 = vweird.f32 %v1186
    %vm1194 = vmor %vm1192, %vm1193
    %v1195 = vsel %vm1194, %v1186, %v1191
    %v1196 = vmul.f32 %v1160, %v1185
    %v1197 = vmul.f32 %v1161, %v1195
    %v1199 = vperm.slane %v1163, 0
    %v1201 = vmul.f32 %v1196, %v1199
    %v1202 = vmul.f32 %v1197, %v1199
    %v1203 = vpack.c.bf16 %v1202, %v1201
    %v1208 = vunpack.c.l.b16 %v720
    %v1209 = vunpack.c.l.b16 %v721
    %v1210 = vunpack.c.l.b16 %v722
    %v1211 = vunpack.c.l.b16 %v723
    %v1212 = vpack.c.b16 %v1209, %v1208
    %v1213 = vpack.c.b16 %v1211, %v1210
    %v1217 = vsel %vm130, %v1203, 0
    %1219 = vmatpush.bf16.msra.mxu0 0
    %1220 = vmatpush.bf16.msra.mxu0 0
    %1221 = vmatpush.bf16.msra.mxu0 0
    %1222 = vmatpush.bf16.msra.mxu0 0
    %1223 = vmatpush.bf16.msra.mxu0 0
    %1224 = vmatpush.bf16.msra.mxu0 0
    %1225 = vmatpush.bf16.msra.mxu0 %v1213
    %1226 = vmatpush.bf16.msra.mxu0 %v1212
    %1227 = vmatmul.bf16.gmra.mxu0 %v1217
    %v1228 = vpop.f32.mrf.mxu0
    %v1229 = vadd.f32 0.0, %v1228
    %v1230 = vpop.f32.mrf.mxu0
    %v1231 = vadd.f32 0.0, %v1230
    %1232 = vdwg.mxu0
    %v1233 = vmul.f32 %v1229, 0.5
    %v1234 = vmul.f32 %v1231, 0.5
    %v1235 = vmul.f32 %v1229, 0.044715
    %v1236 = vmul.f32 %v1231, 0.044715
    %v1237 = vmul.f32 %v1235, %v1229
    %v1238 = vmul.f32 %v1236, %v1231
    %v1239 = vmul.f32 %v1237, %v1229
    %v1240 = vmul.f32 %v1238, %v1231
    %v1241 = vadd.f32 %v1229, %v1239
    %v1242 = vadd.f32 %v1231, %v1240
    %v1243 = vmul.f32 %v1241, 0.7978846
    %v1244 = vmul.f32 %v1242, 0.7978846
    %v1245 = vtanh.pop %v1243
    %v1246 = vtanh.pop %v1244
    %v1247 = vadd.f32 %v1245, 1.0
    %v1248 = vadd.f32 %v1246, 1.0
    %v1249 = vmul.f32 %v1233, %v1247
    %v1250 = vmul.f32 %v1234, %v1248
    %1253 = vrot.lane.b32.xlu0 %v1229, 64
    %v1254 = vpop.permute.xlu0 %1253
    %1255 = vrot.lane.b32.xlu0 %v1231, 64
    %v1256 = vpop.permute.xlu0 %1255
    %v1259 = vmul.f32 %v1249, %v1254
    %v1260 = vmul.f32 %v1250, %v1256
    %v1261 = vpack.c.bf16 %v1260, %v1259
    %v1270 = vunpack.c.l.b16 %v725
    %v1271 = vunpack.c.l.b16 %v726
    %v1272 = vunpack.c.l.b16 %v727
    %v1273 = vunpack.c.l.b16 %v728
    %v1274 = vunpack.c.l.b16 %v729
    %v1275 = vunpack.c.l.b16 %v730
    %v1276 = vunpack.c.l.b16 %v731
    %v1277 = vunpack.c.l.b16 %v732
    %v1278 = vpack.c.b16 %v1271, %v1270
    %v1279 = vpack.c.b16 %v1273, %v1272
    %v1280 = vpack.c.b16 %v1275, %v1274
    %v1281 = vpack.c.b16 %v1277, %v1276
    %v1287 = vsel %vm689, %v1261, 0
    %1289 = vmatpush.bf16.msra.mxu0 0
    %1290 = vmatpush.bf16.msra.mxu0 0
    %1291 = vmatpush.bf16.msra.mxu0 0
    %1292 = vmatpush.bf16.msra.mxu0 0
    %1293 = vmatpush.bf16.msra.mxu0 %v1281
    %1294 = vmatpush.bf16.msra.mxu0 %v1280
    %1295 = vmatpush.bf16.msra.mxu0 %v1279
    %1296 = vmatpush.bf16.msra.mxu0 %v1278
    %1297 = vmatmul.bf16.gmra.mxu0 %v1287
    %v1298 = vpop.f32.mrf.mxu0
    %v1299 = vadd.f32 0.0, %v1298
    %v1300 = vpop.f32.mrf.mxu0
    %v1301 = vadd.f32 0.0, %v1300
    %1302 = vdwg.mxu0
    %v1303 = vadd.f32 %v1160, %v1299
    %v1304 = vadd.f32 %v1161, %v1301
    %v1305 = vld [vmem:[%s8] sm:$0x1]
    %v1306 = vmul.f32 %v1303, %v1303
    %v1307 = vmul.f32 %v1304, %v1304
    %v1308 = vsel %vm130, %v1306, 0.0
    %1309 = vadd.xlane.f32.xlu0 %v1308
    %v1310 = vpop.xlane.xlu0 %1309
    %v1311 = vsel %vm130, %v1307, 0.0
    %1312 = vadd.xlane.f32.xlu0 %v1311
    %v1313 = vpop.xlane.xlu0 %1312
    %v1314 = vmul.f32 %v1310, %v143
    %v1315 = vmul.f32 %v1313, %v143
    %v1316 = vadd.f32 %v1314, 1e-06
    %v1317 = vadd.f32 %v1315, 1e-06
    %v1318 = vrsqrt.pop %v1316
    %v1319 = vmul.f32 %v1318, %v1316
    %v1320 = vmul.f32 %v1319, %v1318
    %v1321 = vmul.f32 0.5, %v1320
    %v1322 = vsub.f32 1.5, %v1321
    %v1323 = vmul.f32 %v1318, %v1322
    %vm1324 = vweird.f32 %v1316
    %vm1325 = vweird.f32 %v1318
    %vm1326 = vmor %vm1324, %vm1325
    %v1327 = vsel %vm1326, %v1318, %v1323
    %v1328 = vrsqrt.pop %v1317
    %v1329 = vmul.f32 %v1328, %v1317
    %v1330 = vmul.f32 %v1329, %v1328
    %v1331 = vmul.f32 0.5, %v1330
    %v1332 = vsub.f32 1.5, %v1331
    %v1333 = vmul.f32 %v1328, %v1332
    %vm1334 = vweird.f32 %v1317
    %vm1335 = vweird.f32 %v1328
    %vm1336 = vmor %vm1334, %vm1335
    %v1337 = vsel %vm1336, %v1328, %v1333
    %v1338 = vmul.f32 %v1303, %v1327
    %v1339 = vmul.f32 %v1304, %v1337
    %v1341 = vperm.slane %v1305, 0
    %v1343 = vmul.f32 %v1338, %v1341
    %v1344 = vmul.f32 %v1339, %v1341
    %1345 = vst.msk [vmem:[#allocation10] sm:$0xff] %vm130, %v1343
    %1346 = vst.msk [vmem:[#allocation10 + $0x8] sm:$0xff] %vm130, %v1344
    // Predicated region
    $region54: #{tpu_custom_call.1} parent=1 // pred_check
      _
    $region55: #{tpu_custom_call.1} parent=1 // pred_check_branch
      %1348 = sbr.rel (0) target = $region57
    $region56: #{tpu_custom_call.1} parent=1 // pred_region
      %1350 = vsyncadd [#allocation4], 0
      %s1351 = sshll.u32 [#allocation10], 4
      %s1352 = int_to_ptr.vmem [resolvable:$true] %s1351
      %s1353 = sshll.u32 %s9, 4
      %s1354 = int_to_ptr.hbm [resolvable:$true] %s1353
      %1359 = dma.vmem_to_hbm [thread:$0]  %s1352, 256, %s1354, [#allocation4], 128, 128, 8
    $region57: #{tpu_custom_call.1} parent=1 // pred_fallthru
      _
    // Predicated region
    $region58: #{tpu_custom_call.1} parent=1 // pred_check
      _
    $region59: #{tpu_custom_call.1} parent=1 // pred_check_branch
      %1361 = sbr.rel (0) target = $region61
    $region60: #{tpu_custom_call.1} parent=1 // pred_region
      %1363 = dma.done [#allocation4], 256
    $region61: #{tpu_custom_call.1} parent=1 // pred_fallthru
      _
    %1364 = vsyncpa [#allocation3], 1
    %1365 = vsyncpa [#allocation6], 1
    %1366 = vsyncpa [#allocation9], 1
    %1367 = vsyncpa [#allocation4], 1

</llo_original>
